<compile_context>
chip_gen: v7x
topology: tpu7x:2x2x1
jax: 0.10.0
libtpu: 0.0.40
codegen_flags: <defaults>
</compile_context>

<pallas_src>
import functools
import math

import jax
import jax.numpy as jnp
import numpy as np
from jax.experimental import pallas as pl
from jax.experimental.pallas import tpu as pltpu

CFG = dict(
    vocab_size=128,
    hidden_dim=64,
    inter_dim=128,
    n_heads=4,
    n_kv_heads=2,
    n_blocks=2,
    rms_eps=1e-5,
    re_base=10000.0,
    max_pos=64,
    attn_scaling=1.0,
)
CFG["head_dim"] = CFG["hidden_dim"] // CFG["n_heads"]
CFG["n_kv_groups"] = CFG["n_heads"] // CFG["n_kv_heads"]


# ----------------------------- shared math helpers -----------------------------
def _rmsnorm(x, w, eps):
    irms = jax.lax.rsqrt(jnp.mean(x * x, axis=-1, keepdims=True) + eps)
    return x * irms * w


def _rotate_half(x):
    half = x.shape[-1] // 2
    return jnp.concatenate([-x[..., half:], x[..., :half]], axis=-1)


# --------------------------------- fused Pallas kernel --------------------------------
def fused_lm_kernel(x_ref, cos_ref, sin_ref,
                    n1_ref, wq_ref, wk_ref, wv_ref, wo_ref,
                    n2_ref, wg_ref, wu_ref, wd_ref,
                    fnorm_ref, emb_ref,
                    o_ref, x_acc,
                    *, n_heads, n_kv_groups, head_dim, eps):
    """One (batch element, layer) grid step of the transformer forward.

    grid = (B, n_layers); axis 0 "parallel", axis 1 "arbitrary".
    x_ref:      (1, T, C)  token embeddings for this batch element.
    cos/sin:    (T, head_dim) rotary tables (shared across batch / layers).
    weights:    per-layer slices streamed via BlockSpec (leading block dim 1).
    o_ref:      (1, T, V) logits, written only at the last layer step.
    x_acc:      (T, C) f32 VMEM scratch carrying the residual stream across layers.
    """
    f32 = jnp.float32
    l = pl.program_id(1)
    n_layers = pl.num_programs(1)
    hd = head_dim
    n_kv_heads = n_heads // n_kv_groups

    @pl.when(l == 0)
    def _init():
        x_acc[...] = x_ref[0].astype(f32)

    x = x_acc[...]                                   # (T, C)
    T = x.shape[0]
    cos = cos_ref[...]                               # (T, hd)
    sin = sin_ref[...]

    # Per-batch causal additive bias (finite & NaN-safe: exp underflows to 0).
    row = jax.lax.broadcasted_iota(jnp.int32, (T, T), 0)
    col = jax.lax.broadcasted_iota(jnp.int32, (T, T), 1)
    bias = jnp.where(row >= col, 0.0, -1e30).astype(f32)

    scale = 1.0 / math.sqrt(hd)
    contract_last = (((1,), (1,)), ((), ()))         # A @ B.T on last dims

    def rope(u):                                     # u: (T, hd)
        # TODO(synk): with head_dim padded to 128, use
        # pltpu.roll(u, hd // 2, axis=1) * sign (XLU rotate) instead of the
        # slice+concat rotate_half.
        return u * cos + _rotate_half(u) * sin

    # ------------------------------ attention ------------------------------
    h = _rmsnorm(x, n1_ref[0], eps)                  # (T, C)
    q = jnp.dot(h, wq_ref[0], preferred_element_type=f32)   # (T, C)
    k = jnp.dot(h, wk_ref[0], preferred_element_type=f32)   # (T, kv_dim)
    v = jnp.dot(h, wv_ref[0], preferred_element_type=f32)   # (T, kv_dim)

    # RoPE once per kv head (shared by its query group).
    k_rope = [rope(k[:, j * hd:(j + 1) * hd]) for j in range(n_kv_heads)]

    heads = []
    for hh in range(n_heads):                        # static unroll (n_heads = 4)
        kv = hh // n_kv_groups                       # GQA repeat_interleave mapping
        qh = rope(q[:, hh * hd:(hh + 1) * hd])
        kh = k_rope[kv]
        vh = v[:, kv * hd:(kv + 1) * hd]
        s = jax.lax.dot_general(qh, kh, contract_last,
                                preferred_element_type=f32)   # (T, T)
        p = jax.nn.softmax(s * scale + bias, axis=-1)
        heads.append(jnp.dot(p, vh, preferred_element_type=f32))
    # TODO(synk): head-batched einsum with head_dim=128 removes these
    # sub-128-lane slices and this lane concat at real sizes.
    y = jnp.concatenate(heads, axis=-1)              # (T, C)
    x = x + jnp.dot(y, wo_ref[0], preferred_element_type=f32)

    # ------------------------------ MLP (SwiGLU) ----------------------------
    h2 = _rmsnorm(x, n2_ref[0], eps)
    gate = jnp.dot(h2, wg_ref[0], preferred_element_type=f32)
    up = jnp.dot(h2, wu_ref[0], preferred_element_type=f32)
    x = x + jnp.dot(jax.nn.silu(gate) * up, wd_ref[0],
                    preferred_element_type=f32)

    x_acc[...] = x

    # ------------------- final norm + tied LM head (last layer) -------------
    @pl.when(l == n_layers - 1)
    def _emit():
        hf = _rmsnorm(x, fnorm_ref[...], eps)
        # emb consumed transposed on the MXU (no host-side emb.T).
        # TODO(synk): for real vocab sizes, add a vocab grid axis and stream
        # emb through a BlockSpec instead of holding it whole in VMEM.
        logits = jax.lax.dot_general(hf, emb_ref[...], contract_last,
                                     preferred_element_type=f32)  # (T, V)
        o_ref[0] = logits.astype(o_ref.dtype)


# --------------------------------- wrappers / glue --------------------------------
def rotary_cos_sin(T, cfg):
    """cos/sin tables of shape (T, head_dim), shared across batch elements."""
    hd = cfg["head_dim"]
    inv_freq = 1.0 / cfg["re_base"] ** (
        jnp.arange(0, hd, 2, dtype=jnp.float32) / hd)
    pos = jnp.arange(T, dtype=jnp.float32)
    freqs = pos[:, None] * inv_freq[None, :]
    emb = jnp.concatenate([freqs, freqs], axis=-1)
    return jnp.cos(emb) * cfg["attn_scaling"], jnp.sin(emb) * cfg["attn_scaling"]


def prepare_params(params, cfg):
    """One-time prep: stack per-layer weights for the layer grid axis."""
    L = cfg["n_blocks"]
    C = cfg["hidden_dim"]

    def stack(name):
        return jnp.stack([b[name] for b in params["blocks"]])

    # TODO(synk): cast the weight stacks to bf16 here (keep f32 accumulation
    # via preferred_element_type) to halve weight DMA/VMEM on v6e/v7x.
    return dict(
        emb=params["emb"],
        norm=params["norm"].reshape(1, C),
        n1=stack("n1").reshape(L, 1, C),
        n2=stack("n2").reshape(L, 1, C),
        wq=stack("wq"), wk=stack("wk"), wv=stack("wv"), wo=stack("wo"),
        wg=stack("wg"), wu=stack("wu"), wd=stack("wd"),
    )


def language_model_forward(tokens, prepped, cfg=CFG):
    B, T = tokens.shape
    C = cfg["hidden_dim"]
    I = cfg["inter_dim"]
    V = cfg["vocab_size"]
    hd = cfg["head_dim"]
    kv_dim = cfg["n_kv_heads"] * hd
    L = cfg["n_blocks"]

    # token embedding gather (glue), kept outside the kernel
    x = jnp.take(prepped["emb"], tokens, axis=0)               # (B, T, C)
    cos, sin = rotary_cos_sin(T, cfg)                          # (T, hd)

    kernel = functools.partial(
        fused_lm_kernel,
        n_heads=cfg["n_heads"],
        n_kv_groups=cfg["n_kv_groups"],
        head_dim=hd,
        eps=cfg["rms_eps"])

    grid = (B, L)   # batch "parallel" (v7x megacore), layers "arbitrary" (carry)

    in_specs = [
        pl.BlockSpec((1, T, C), lambda b, l: (b, 0, 0)),        # x
        pl.BlockSpec((T, hd), lambda b, l: (0, 0)),             # cos
        pl.BlockSpec((T, hd), lambda b, l: (0, 0)),             # sin
        pl.BlockSpec((1, 1, C), lambda b, l: (l, 0, 0)),        # n1
        pl.BlockSpec((1, C, C), lambda b, l: (l, 0, 0)),        # wq
        pl.BlockSpec((1, C, kv_dim), lambda b, l: (l, 0, 0)),   # wk
        pl.BlockSpec((1, C, kv_dim), lambda b, l: (l, 0, 0)),   # wv
        pl.BlockSpec((1, C, C), lambda b, l: (l, 0, 0)),        # wo
        pl.BlockSpec((1, 1, C), lambda b, l: (l, 0, 0)),        # n2
        pl.BlockSpec((1, C, I), lambda b, l: (l, 0, 0)),        # wg
        pl.BlockSpec((1, C, I), lambda b, l: (l, 0, 0)),        # wu
        pl.BlockSpec((1, I, C), lambda b, l: (l, 0, 0)),        # wd
        pl.BlockSpec((1, C), lambda b, l: (0, 0)),              # final norm
        pl.BlockSpec((V, C), lambda b, l: (0, 0)),              # emb (tied head)
    ]
    out_spec = pl.BlockSpec((1, T, V), lambda b, l: (b, 0, 0))  # lane-dense logits

    logits = pl.pallas_call(
        kernel,
        out_shape=jax.ShapeDtypeStruct((B, T, V), jnp.float32),
        grid_spec=pltpu.PrefetchScalarGridSpec(
            num_scalar_prefetch=0,
            grid=grid,
            in_specs=in_specs,
            out_specs=out_spec,
            scratch_shapes=[pltpu.VMEM((T, C), jnp.float32)],   # residual carry
        ),
        compiler_params=pltpu.CompilerParams(
            dimension_semantics=("parallel", "arbitrary")),
    )(x, cos, sin,
      prepped["n1"], prepped["wq"], prepped["wk"], prepped["wv"], prepped["wo"],
      prepped["n2"], prepped["wg"], prepped["wu"], prepped["wd"],
      prepped["norm"], prepped["emb"])
    return logits


# ----------------------------- deterministic init & reference -----------------------------
def init_params(key, cfg):
    C, I, V = cfg["hidden_dim"], cfg["inter_dim"], cfg["vocab_size"]
    kv_dim = cfg["n_kv_heads"] * cfg["head_dim"]
    std = 0.02
    keys = jax.random.split(key, 1 + 7 * cfg["n_blocks"])
    emb = std * jax.random.normal(keys[0], (V, C), jnp.float32)
    blocks = []
    ki = 1
    for _ in range(cfg["n_blocks"]):
        blocks.append(dict(
            n1=jnp.ones((C,), jnp.float32),
            n2=jnp.ones((C,), jnp.float32),
            wq=std * jax.random.normal(keys[ki + 0], (C, C), jnp.float32),
            wk=std * jax.random.normal(keys[ki + 1], (C, kv_dim), jnp.float32),
            wv=std * jax.random.normal(keys[ki + 2], (C, kv_dim), jnp.float32),
            wo=std * jax.random.normal(keys[ki + 3], (C, C), jnp.float32),
            wg=std * jax.random.normal(keys[ki + 4], (C, I), jnp.float32),
            wu=std * jax.random.normal(keys[ki + 5], (C, I), jnp.float32),
            wd=std * jax.random.normal(keys[ki + 6], (I, C), jnp.float32),
        ))
        ki += 7
    return dict(emb=emb, blocks=blocks, norm=jnp.ones((C,), jnp.float32))


def ref_forward(tokens, params, cfg=CFG):
    """Pure-JAX reference mirroring the PyTorch module (for verification)."""
    eps = cfg["rms_eps"]
    nh, nkv, hd = cfg["n_heads"], cfg["n_kv_heads"], cfg["head_dim"]
    groups = cfg["n_kv_groups"]
    x = params["emb"][tokens]
    B, T, C = x.shape
    cos, sin = rotary_cos_sin(T, cfg)
    cos4 = jnp.broadcast_to(cos[None, None], (B, 1, T, hd))
    sin4 = jnp.broadcast_to(sin[None, None], (B, 1, T, hd))
    mask = jnp.tril(jnp.ones((T, T), bool))
    for p in params["blocks"]:
        h = _rmsnorm(x, p["n1"], eps)
        q = (h @ p["wq"]).reshape(B, T, nh, hd).transpose(0, 2, 1, 3)
        k = (h @ p["wk"]).reshape(B, T, nkv, hd).transpose(0, 2, 1, 3)
        v = (h @ p["wv"]).reshape(B, T, nkv, hd).transpose(0, 2, 1, 3)
        q = q * cos4 + _rotate_half(q) * sin4
        k = k * cos4 + _rotate_half(k) * sin4
        k = jnp.repeat(k, groups, axis=1)
        v = jnp.repeat(v, groups, axis=1)
        s = (q @ k.transpose(0, 1, 3, 2)) / math.sqrt(hd)
        s = jnp.where(mask, s, -jnp.inf)
        a = jax.nn.softmax(s, axis=-1)
        y = (a @ v).transpose(0, 2, 1, 3).reshape(B, T, C)
        x = x + y @ p["wo"]
        h2 = _rmsnorm(x, p["n2"], eps)
        x = x + (jax.nn.silu(h2 @ p["wg"]) * (h2 @ p["wu"])) @ p["wd"]
    x = _rmsnorm(x, params["norm"], eps)
    return x @ params["emb"].T


# ----------------------------------------- main -----------------------------------------
if __name__ == "__main__":
    cfg = CFG
    key = jax.random.PRNGKey(0)
    pkey, tkey = jax.random.split(key)
    params = init_params(pkey, cfg)
    prepped = prepare_params(params, cfg)      # one-time weight prep (outside jit)

    B, T = 2, 8
    tokens = jax.random.randint(tkey, (B, T), 0, cfg["vocab_size"])

    logits = jax.jit(language_model_forward)(tokens, prepped)
    jax.block_until_ready(logits)

    assert logits.shape == (B, T, cfg["vocab_size"])
    assert bool(jnp.all(jnp.isfinite(logits)))

    ref = ref_forward(tokens, params)
    np.testing.assert_allclose(np.asarray(logits), np.asarray(ref),
                               rtol=2e-3, atol=2e-3)
    print("KERNEL_OK")
</pallas_src>

<mosaic_0001>
module attributes {stable_mosaic.version = 11 : i64} {
  func.func @fused_lm_kernel(%arg0: i32, %arg1: i32, %arg2: memref<1x8x64xf32, #tpu.memory_space<vmem>>, %arg3: memref<8x16xf32, #tpu.memory_space<vmem>>, %arg4: memref<8x16xf32, #tpu.memory_space<vmem>>, %arg5: memref<1x1x64xf32, #tpu.memory_space<vmem>>, %arg6: memref<1x64x64xf32, #tpu.memory_space<vmem>>, %arg7: memref<1x64x32xf32, #tpu.memory_space<vmem>>, %arg8: memref<1x64x32xf32, #tpu.memory_space<vmem>>, %arg9: memref<1x64x64xf32, #tpu.memory_space<vmem>>, %arg10: memref<1x1x64xf32, #tpu.memory_space<vmem>>, %arg11: memref<1x64x128xf32, #tpu.memory_space<vmem>>, %arg12: memref<1x64x128xf32, #tpu.memory_space<vmem>>, %arg13: memref<1x128x64xf32, #tpu.memory_space<vmem>>, %arg14: memref<1x64xf32, #tpu.memory_space<vmem>>, %arg15: memref<128x64xf32, #tpu.memory_space<vmem>>, %arg16: memref<1x8x128xf32, #tpu.memory_space<vmem>>, %arg17: memref<8x64xf32, #tpu.memory_space<vmem>>) attributes {dimension_semantics = [#tpu.dimension_semantics<parallel>, #tpu.dimension_semantics<arbitrary>], iteration_bounds = array<i64: 2, 2>, scalar_prefetch = 0 : i64, scratch_operands = 1 : i64, tpu.core_type = #tpu.core_type<tc>, window_params = [{transform_indices = @transform_0, window_bounds = array<i64: 1, 8, 64>}, {pipeline_mode = #tpu.pipeline_mode<synchronous>, transform_indices = @transform_1, window_bounds = array<i64: 8, 16>}, {pipeline_mode = #tpu.pipeline_mode<synchronous>, transform_indices = @transform_2, window_bounds = array<i64: 8, 16>}, {transform_indices = @transform_3, window_bounds = array<i64: 1, 1, 64>}, {transform_indices = @transform_4, window_bounds = array<i64: 1, 64, 64>}, {transform_indices = @transform_5, window_bounds = array<i64: 1, 64, 32>}, {transform_indices = @transform_6, window_bounds = array<i64: 1, 64, 32>}, {transform_indices = @transform_7, window_bounds = array<i64: 1, 64, 64>}, {transform_indices = @transform_8, window_bounds = array<i64: 1, 1, 64>}, {transform_indices = @transform_9, window_bounds = array<i64: 1, 64, 128>}, {transform_indices = @transform_10, window_bounds = array<i64: 1, 64, 128>}, {transform_indices = @transform_11, window_bounds = array<i64: 1, 128, 64>}, {pipeline_mode = #tpu.pipeline_mode<synchronous>, transform_indices = @transform_12, window_bounds = array<i64: 1, 64>}, {pipeline_mode = #tpu.pipeline_mode<synchronous>, transform_indices = @transform_13, window_bounds = array<i64: 128, 64>}, {transform_indices = @transform_14, window_bounds = array<i64: 1, 8, 128>}]} {
    %c0_i32 = arith.constant 0 : i32
    %0 = arith.cmpi eq, %arg1, %c0_i32 : i32
    %1 = arith.extui %0 : i1 to i32
    %c0_i32_0 = arith.constant 0 : i32
    %2 = arith.cmpi ne, %1, %c0_i32_0 : i32
    scf.if %2 {
      %c0_81 = arith.constant 0 : index
      %c0_82 = arith.constant 0 : index
      %c0_83 = arith.constant 0 : index
      %197 = vector.load %arg2[%c0_81, %c0_82, %c0_83] : memref<1x8x64xf32, #tpu.memory_space<vmem>>, vector<1x8x64xf32>
      %198 = vector.shape_cast %197 : vector<1x8x64xf32> to vector<8x64xf32>
      %c0_84 = arith.constant 0 : index
      %c0_85 = arith.constant 0 : index
      %199 = vector.load %arg17[%c0_84, %c0_85] : memref<8x64xf32, #tpu.memory_space<vmem>>, vector<8x64xf32>
      tpu.vector_store %arg17[%c0_84, %c0_85], %198 {strides = array<i32>} : memref<8x64xf32, #tpu.memory_space<vmem>>, vector<8x64xf32>,
    } else {
    }
    %c0 = arith.constant 0 : index
    %c0_1 = arith.constant 0 : index
    %3 = vector.load %arg17[%c0, %c0_1] : memref<8x64xf32, #tpu.memory_space<vmem>>, vector<8x64xf32>
    %c0_2 = arith.constant 0 : index
    %c0_3 = arith.constant 0 : index
    %4 = vector.load %arg3[%c0_2, %c0_3] : memref<8x16xf32, #tpu.memory_space<vmem>>, vector<8x16xf32>
    %c0_4 = arith.constant 0 : index
    %c0_5 = arith.constant 0 : index
    %5 = vector.load %arg4[%c0_4, %c0_5] : memref<8x16xf32, #tpu.memory_space<vmem>>, vector<8x16xf32>
    %6 = tpu.iota {dimensions = array<i32: 0>} : vector<8x8xi32>
    %7 = tpu.iota {dimensions = array<i32: 1>} : vector<8x8xi32>
    %8 = arith.cmpi sge, %6, %7 : vector<8x8xi32>
    %cst = arith.constant 0.000000e+00 : f32
    %cst_6 = arith.constant -1.000000e+30 : f32
    %9 = vector.broadcast %cst : f32 to vector<8x8xf32>
    %10 = vector.broadcast %cst_6 : f32 to vector<8x8xf32>
    %11 = arith.select %8, %9, %10 : vector<8x8xi1>, vector<8x8xf32>
    %c0_7 = arith.constant 0 : index
    %c0_8 = arith.constant 0 : index
    %c0_9 = arith.constant 0 : index
    %12 = vector.load %arg5[%c0_7, %c0_8, %c0_9] : memref<1x1x64xf32, #tpu.memory_space<vmem>>, vector<1x1x64xf32>
    %13 = vector.shape_cast %12 : vector<1x1x64xf32> to vector<1x64xf32>
    %14 = arith.mulf %3, %3 : vector<8x64xf32>
    %cst_10 = arith.constant dense<0.000000e+00> : vector<8xf32>
    %15 = vector.multi_reduction <add>, %14, %cst_10 [1] : vector<8x64xf32> to vector<8xf32>
    %16 = vector.shape_cast %15 : vector<8xf32> to vector<8x1xf32>
    %cst_11 = arith.constant 6.400000e+01 : f32
    %17 = vector.broadcast %cst_11 : f32 to vector<8x1xf32>
    %18 = arith.divf %16, %17 : vector<8x1xf32>
    %cst_12 = arith.constant 9.99999974E-6 : f32
    %19 = vector.broadcast %cst_12 : f32 to vector<8x1xf32>
    %20 = arith.addf %18, %19 : vector<8x1xf32>
    %21 = math.rsqrt %20 : vector<8x1xf32>
    %22 = vector.broadcast %21 : vector<8x1xf32> to vector<8x64xf32>
    %23 = arith.mulf %3, %22 : vector<8x64xf32>
    %24 = vector.broadcast %13 : vector<1x64xf32> to vector<8x64xf32>
    %25 = arith.mulf %23, %24 : vector<8x64xf32>
    %c0_13 = arith.constant 0 : index
    %c0_14 = arith.constant 0 : index
    %c0_15 = arith.constant 0 : index
    %26 = vector.load %arg6[%c0_13, %c0_14, %c0_15] : memref<1x64x64xf32, #tpu.memory_space<vmem>>, vector<1x64x64xf32>
    %27 = vector.shape_cast %26 : vector<1x64x64xf32> to vector<64x64xf32>
    %cst_16 = arith.constant dense<0.000000e+00> : vector<8x64xf32>
    %28 = tpu.matmul %25, %27, %cst_16 {dimension_numbers = #tpu.dot_dimension_numbers<[1], [0], [0], [1], [0, 0, 1, 1], [], []>} : vector<8x64xf32>, vector<64x64xf32>, vector<8x64xf32> -> vector<8x64xf32>
    %c0_17 = arith.constant 0 : index
    %c0_18 = arith.constant 0 : index
    %c0_19 = arith.constant 0 : index
    %29 = vector.load %arg7[%c0_17, %c0_18, %c0_19] : memref<1x64x32xf32, #tpu.memory_space<vmem>>, vector<1x64x32xf32>
    %30 = vector.shape_cast %29 : vector<1x64x32xf32> to vector<64x32xf32>
    %cst_20 = arith.constant dense<0.000000e+00> : vector<8x32xf32>
    %31 = tpu.matmul %25, %30, %cst_20 {dimension_numbers = #tpu.dot_dimension_numbers<[1], [0], [0], [1], [0, 0, 1, 1], [], []>} : vector<8x64xf32>, vector<64x32xf32>, vector<8x32xf32> -> vector<8x32xf32>
    %c0_21 = arith.constant 0 : index
    %c0_22 = arith.constant 0 : index
    %c0_23 = arith.constant 0 : index
    %32 = vector.load %arg8[%c0_21, %c0_22, %c0_23] : memref<1x64x32xf32, #tpu.memory_space<vmem>>, vector<1x64x32xf32>
    %33 = vector.shape_cast %32 : vector<1x64x32xf32> to vector<64x32xf32>
    %cst_24 = arith.constant dense<0.000000e+00> : vector<8x32xf32>
    %34 = tpu.matmul %25, %33, %cst_24 {dimension_numbers = #tpu.dot_dimension_numbers<[1], [0], [0], [1], [0, 0, 1, 1], [], []>} : vector<8x64xf32>, vector<64x32xf32>, vector<8x32xf32> -> vector<8x32xf32>
    %35 = vector.extract_strided_slice %31 {offsets = [0, 0], sizes = [8, 16], strides = [1, 1]} : vector<8x32xf32> to vector<8x16xf32>
    %36 = arith.mulf %35, %4 : vector<8x16xf32>
    %37 = vector.extract_strided_slice %35 {offsets = [0, 8], sizes = [8, 8], strides = [1, 1]} : vector<8x16xf32> to vector<8x8xf32>
    %cst_25 = arith.constant 0.000000e+00 : f32
    %38 = vector.broadcast %cst_25 : f32 to vector<8x8xf32>
    %39 = arith.subf %38, %37 : vector<8x8xf32>
    %40 = vector.extract_strided_slice %35 {offsets = [0, 0], sizes = [8, 8], strides = [1, 1]} : vector<8x16xf32> to vector<8x8xf32>
    %41 = tpu.concatenate %39, %40 in 1 : vector<8x8xf32>, vector<8x8xf32> -> vector<8x16xf32>
    %42 = arith.mulf %41, %5 : vector<8x16xf32>
    %43 = arith.addf %36, %42 : vector<8x16xf32>
    %44 = vector.extract_strided_slice %31 {offsets = [0, 16], sizes = [8, 16], strides = [1, 1]} : vector<8x32xf32> to vector<8x16xf32>
    %45 = arith.mulf %44, %4 : vector<8x16xf32>
    %46 = vector.extract_strided_slice %44 {offsets = [0, 8], sizes = [8, 8], strides = [1, 1]} : vector<8x16xf32> to vector<8x8xf32>
    %cst_26 = arith.constant 0.000000e+00 : f32
    %47 = vector.broadcast %cst_26 : f32 to vector<8x8xf32>
    %48 = arith.subf %47, %46 : vector<8x8xf32>
    %49 = vector.extract_strided_slice %44 {offsets = [0, 0], sizes = [8, 8], strides = [1, 1]} : vector<8x16xf32> to vector<8x8xf32>
    %50 = tpu.concatenate %48, %49 in 1 : vector<8x8xf32>, vector<8x8xf32> -> vector<8x16xf32>
    %51 = arith.mulf %50, %5 : vector<8x16xf32>
    %52 = arith.addf %45, %51 : vector<8x16xf32>
    %53 = vector.extract_strided_slice %28 {offsets = [0, 0], sizes = [8, 16], strides = [1, 1]} : vector<8x64xf32> to vector<8x16xf32>
    %54 = arith.mulf %53, %4 : vector<8x16xf32>
    %55 = vector.extract_strided_slice %53 {offsets = [0, 8], sizes = [8, 8], strides = [1, 1]} : vector<8x16xf32> to vector<8x8xf32>
    %cst_27 = arith.constant 0.000000e+00 : f32
    %56 = vector.broadcast %cst_27 : f32 to vector<8x8xf32>
    %57 = arith.subf %56, %55 : vector<8x8xf32>
    %58 = vector.extract_strided_slice %53 {offsets = [0, 0], sizes = [8, 8], strides = [1, 1]} : vector<8x16xf32> to vector<8x8xf32>
    %59 = tpu.concatenate %57, %58 in 1 : vector<8x8xf32>, vector<8x8xf32> -> vector<8x16xf32>
    %60 = arith.mulf %59, %5 : vector<8x16xf32>
    %61 = arith.addf %54, %60 : vector<8x16xf32>
    %62 = vector.extract_strided_slice %34 {offsets = [0, 0], sizes = [8, 16], strides = [1, 1]} : vector<8x32xf32> to vector<8x16xf32>
    %cst_28 = arith.constant dense<0.000000e+00> : vector<8x8xf32>
    %63 = tpu.matmul %61, %43, %cst_28 {dimension_numbers = #tpu.dot_dimension_numbers<[1], [1], [0], [0], [0, 0, 1, 0], [], []>} : vector<8x16xf32>, vector<8x16xf32>, vector<8x8xf32> -> vector<8x8xf32>
    %cst_29 = arith.constant 2.500000e-01 : f32
    %64 = vector.broadcast %cst_29 : f32 to vector<8x8xf32>
    %65 = arith.mulf %63, %64 : vector<8x8xf32>
    %66 = arith.addf %65, %11 : vector<8x8xf32>
    %cst_30 = arith.constant dense<0xFF800000> : vector<8xf32>
    %67 = vector.multi_reduction <maximumf>, %66, %cst_30 [1] : vector<8x8xf32> to vector<8xf32>
    %cst_31 = arith.constant 0xFF800000 : f32
    %68 = vector.broadcast %cst_31 : f32 to vector<8xf32>
    %69 = arith.maximumf %68, %67 : vector<8xf32>
    %70 = vector.shape_cast %69 : vector<8xf32> to vector<8x1xf32>
    %71 = vector.broadcast %70 : vector<8x1xf32> to vector<8x8xf32>
    %72 = arith.subf %66, %71 : vector<8x8xf32>
    %73 = math.exp %72 : vector<8x8xf32>
    %cst_32 = arith.constant dense<0.000000e+00> : vector<8xf32>
    %74 = vector.multi_reduction <add>, %73, %cst_32 [1] : vector<8x8xf32> to vector<8xf32>
    %75 = vector.shape_cast %74 : vector<8xf32> to vector<8x1xf32>
    %76 = vector.broadcast %75 : vector<8x1xf32> to vector<8x8xf32>
    %77 = arith.divf %73, %76 : vector<8x8xf32>
    %cst_33 = arith.constant dense<0.000000e+00> : vector<8x16xf32>
    %78 = tpu.matmul %77, %62, %cst_33 {dimension_numbers = #tpu.dot_dimension_numbers<[1], [0], [0], [1], [0, 0, 1, 1], [], []>} : vector<8x8xf32>, vector<8x16xf32>, vector<8x16xf32> -> vector<8x16xf32>
    %79 = vector.extract_strided_slice %28 {offsets = [0, 16], sizes = [8, 16], strides = [1, 1]} : vector<8x64xf32> to vector<8x16xf32>
    %80 = arith.mulf %79, %4 : vector<8x16xf32>
    %81 = vector.extract_strided_slice %79 {offsets = [0, 8], sizes = [8, 8], strides = [1, 1]} : vector<8x16xf32> to vector<8x8xf32>
    %cst_34 = arith.constant 0.000000e+00 : f32
    %82 = vector.broadcast %cst_34 : f32 to vector<8x8xf32>
    %83 = arith.subf %82, %81 : vector<8x8xf32>
    %84 = vector.extract_strided_slice %79 {offsets = [0, 0], sizes = [8, 8], strides = [1, 1]} : vector<8x16xf32> to vector<8x8xf32>
    %85 = tpu.concatenate %83, %84 in 1 : vector<8x8xf32>, vector<8x8xf32> -> vector<8x16xf32>
    %86 = arith.mulf %85, %5 : vector<8x16xf32>
    %87 = arith.addf %80, %86 : vector<8x16xf32>
    %88 = vector.extract_strided_slice %34 {offsets = [0, 0], sizes = [8, 16], strides = [1, 1]} : vector<8x32xf32> to vector<8x16xf32>
    %cst_35 = arith.constant dense<0.000000e+00> : vector<8x8xf32>
    %89 = tpu.matmul %87, %43, %cst_35 {dimension_numbers = #tpu.dot_dimension_numbers<[1], [1], [0], [0], [0, 0, 1, 0], [], []>} : vector<8x16xf32>, vector<8x16xf32>, vector<8x8xf32> -> vector<8x8xf32>
    %cst_36 = arith.constant 2.500000e-01 : f32
    %90 = vector.broadcast %cst_36 : f32 to vector<8x8xf32>
    %91 = arith.mulf %89, %90 : vector<8x8xf32>
    %92 = arith.addf %91, %11 : vector<8x8xf32>
    %cst_37 = arith.constant dense<0xFF800000> : vector<8xf32>
    %93 = vector.multi_reduction <maximumf>, %92, %cst_37 [1] : vector<8x8xf32> to vector<8xf32>
    %cst_38 = arith.constant 0xFF800000 : f32
    %94 = vector.broadcast %cst_38 : f32 to vector<8xf32>
    %95 = arith.maximumf %94, %93 : vector<8xf32>
    %96 = vector.shape_cast %95 : vector<8xf32> to vector<8x1xf32>
    %97 = vector.broadcast %96 : vector<8x1xf32> to vector<8x8xf32>
    %98 = arith.subf %92, %97 : vector<8x8xf32>
    %99 = math.exp %98 : vector<8x8xf32>
    %cst_39 = arith.constant dense<0.000000e+00> : vector<8xf32>
    %100 = vector.multi_reduction <add>, %99, %cst_39 [1] : vector<8x8xf32> to vector<8xf32>
    %101 = vector.shape_cast %100 : vector<8xf32> to vector<8x1xf32>
    %102 = vector.broadcast %101 : vector<8x1xf32> to vector<8x8xf32>
    %103 = arith.divf %99, %102 : vector<8x8xf32>
    %cst_40 = arith.constant dense<0.000000e+00> : vector<8x16xf32>
    %104 = tpu.matmul %103, %88, %cst_40 {dimension_numbers = #tpu.dot_dimension_numbers<[1], [0], [0], [1], [0, 0, 1, 1], [], []>} : vector<8x8xf32>, vector<8x16xf32>, vector<8x16xf32> -> vector<8x16xf32>
    %105 = vector.extract_strided_slice %28 {offsets = [0, 32], sizes = [8, 16], strides = [1, 1]} : vector<8x64xf32> to vector<8x16xf32>
    %106 = arith.mulf %105, %4 : vector<8x16xf32>
    %107 = vector.extract_strided_slice %105 {offsets = [0, 8], sizes = [8, 8], strides = [1, 1]} : vector<8x16xf32> to vector<8x8xf32>
    %cst_41 = arith.constant 0.000000e+00 : f32
    %108 = vector.broadcast %cst_41 : f32 to vector<8x8xf32>
    %109 = arith.subf %108, %107 : vector<8x8xf32>
    %110 = vector.extract_strided_slice %105 {offsets = [0, 0], sizes = [8, 8], strides = [1, 1]} : vector<8x16xf32> to vector<8x8xf32>
    %111 = tpu.concatenate %109, %110 in 1 : vector<8x8xf32>, vector<8x8xf32> -> vector<8x16xf32>
    %112 = arith.mulf %111, %5 : vector<8x16xf32>
    %113 = arith.addf %106, %112 : vector<8x16xf32>
    %114 = vector.extract_strided_slice %34 {offsets = [0, 16], sizes = [8, 16], strides = [1, 1]} : vector<8x32xf32> to vector<8x16xf32>
    %cst_42 = arith.constant dense<0.000000e+00> : vector<8x8xf32>
    %115 = tpu.matmul %113, %52, %cst_42 {dimension_numbers = #tpu.dot_dimension_numbers<[1], [1], [0], [0], [0, 0, 1, 0], [], []>} : vector<8x16xf32>, vector<8x16xf32>, vector<8x8xf32> -> vector<8x8xf32>
    %cst_43 = arith.constant 2.500000e-01 : f32
    %116 = vector.broadcast %cst_43 : f32 to vector<8x8xf32>
    %117 = arith.mulf %115, %116 : vector<8x8xf32>
    %118 = arith.addf %117, %11 : vector<8x8xf32>
    %cst_44 = arith.constant dense<0xFF800000> : vector<8xf32>
    %119 = vector.multi_reduction <maximumf>, %118, %cst_44 [1] : vector<8x8xf32> to vector<8xf32>
    %cst_45 = arith.constant 0xFF800000 : f32
    %120 = vector.broadcast %cst_45 : f32 to vector<8xf32>
    %121 = arith.maximumf %120, %119 : vector<8xf32>
    %122 = vector.shape_cast %121 : vector<8xf32> to vector<8x1xf32>
    %123 = vector.broadcast %122 : vector<8x1xf32> to vector<8x8xf32>
    %124 = arith.subf %118, %123 : vector<8x8xf32>
    %125 = math.exp %124 : vector<8x8xf32>
    %cst_46 = arith.constant dense<0.000000e+00> : vector<8xf32>
    %126 = vector.multi_reduction <add>, %125, %cst_46 [1] : vector<8x8xf32> to vector<8xf32>
    %127 = vector.shape_cast %126 : vector<8xf32> to vector<8x1xf32>
    %128 = vector.broadcast %127 : vector<8x1xf32> to vector<8x8xf32>
    %129 = arith.divf %125, %128 : vector<8x8xf32>
    %cst_47 = arith.constant dense<0.000000e+00> : vector<8x16xf32>
    %130 = tpu.matmul %129, %114, %cst_47 {dimension_numbers = #tpu.dot_dimension_numbers<[1], [0], [0], [1], [0, 0, 1, 1], [], []>} : vector<8x8xf32>, vector<8x16xf32>, vector<8x16xf32> -> vector<8x16xf32>
    %131 = vector.extract_strided_slice %28 {offsets = [0, 48], sizes = [8, 16], strides = [1, 1]} : vector<8x64xf32> to vector<8x16xf32>
    %132 = arith.mulf %131, %4 : vector<8x16xf32>
    %133 = vector.extract_strided_slice %131 {offsets = [0, 8], sizes = [8, 8], strides = [1, 1]} : vector<8x16xf32> to vector<8x8xf32>
    %cst_48 = arith.constant 0.000000e+00 : f32
    %134 = vector.broadcast %cst_48 : f32 to vector<8x8xf32>
    %135 = arith.subf %134, %133 : vector<8x8xf32>
    %136 = vector.extract_strided_slice %131 {offsets = [0, 0], sizes = [8, 8], strides = [1, 1]} : vector<8x16xf32> to vector<8x8xf32>
    %137 = tpu.concatenate %135, %136 in 1 : vector<8x8xf32>, vector<8x8xf32> -> vector<8x16xf32>
    %138 = arith.mulf %137, %5 : vector<8x16xf32>
    %139 = arith.addf %132, %138 : vector<8x16xf32>
    %140 = vector.extract_strided_slice %34 {offsets = [0, 16], sizes = [8, 16], strides = [1, 1]} : vector<8x32xf32> to vector<8x16xf32>
    %cst_49 = arith.constant dense<0.000000e+00> : vector<8x8xf32>
    %141 = tpu.matmul %139, %52, %cst_49 {dimension_numbers = #tpu.dot_dimension_numbers<[1], [1], [0], [0], [0, 0, 1, 0], [], []>} : vector<8x16xf32>, vector<8x16xf32>, vector<8x8xf32> -> vector<8x8xf32>
    %cst_50 = arith.constant 2.500000e-01 : f32
    %142 = vector.broadcast %cst_50 : f32 to vector<8x8xf32>
    %143 = arith.mulf %141, %142 : vector<8x8xf32>
    %144 = arith.addf %143, %11 : vector<8x8xf32>
    %cst_51 = arith.constant dense<0xFF800000> : vector<8xf32>
    %145 = vector.multi_reduction <maximumf>, %144, %cst_51 [1] : vector<8x8xf32> to vector<8xf32>
    %cst_52 = arith.constant 0xFF800000 : f32
    %146 = vector.broadcast %cst_52 : f32 to vector<8xf32>
    %147 = arith.maximumf %146, %145 : vector<8xf32>
    %148 = vector.shape_cast %147 : vector<8xf32> to vector<8x1xf32>
    %149 = vector.broadcast %148 : vector<8x1xf32> to vector<8x8xf32>
    %150 = arith.subf %144, %149 : vector<8x8xf32>
    %151 = math.exp %150 : vector<8x8xf32>
    %cst_53 = arith.constant dense<0.000000e+00> : vector<8xf32>
    %152 = vector.multi_reduction <add>, %151, %cst_53 [1] : vector<8x8xf32> to vector<8xf32>
    %153 = vector.shape_cast %152 : vector<8xf32> to vector<8x1xf32>
    %154 = vector.broadcast %153 : vector<8x1xf32> to vector<8x8xf32>
    %155 = arith.divf %151, %154 : vector<8x8xf32>
    %cst_54 = arith.constant dense<0.000000e+00> : vector<8x16xf32>
    %156 = tpu.matmul %155, %140, %cst_54 {dimension_numbers = #tpu.dot_dimension_numbers<[1], [0], [0], [1], [0, 0, 1, 1], [], []>} : vector<8x8xf32>, vector<8x16xf32>, vector<8x16xf32> -> vector<8x16xf32>
    %157 = tpu.concatenate %78, %104, %130, %156 in 1 : vector<8x16xf32>, vector<8x16xf32>, vector<8x16xf32>, vector<8x16xf32> -> vector<8x64xf32>
    %c0_55 = arith.constant 0 : index
    %c0_56 = arith.constant 0 : index
    %c0_57 = arith.constant 0 : index
    %158 = vector.load %arg9[%c0_55, %c0_56, %c0_57] : memref<1x64x64xf32, #tpu.memory_space<vmem>>, vector<1x64x64xf32>
    %159 = vector.shape_cast %158 : vector<1x64x64xf32> to vector<64x64xf32>
    %cst_58 = arith.constant dense<0.000000e+00> : vector<8x64xf32>
    %160 = tpu.matmul %157, %159, %cst_58 {dimension_numbers = #tpu.dot_dimension_numbers<[1], [0], [0], [1], [0, 0, 1, 1], [], []>} : vector<8x64xf32>, vector<64x64xf32>, vector<8x64xf32> -> vector<8x64xf32>
    %161 = arith.addf %3, %160 : vector<8x64xf32>
    %c0_59 = arith.constant 0 : index
    %c0_60 = arith.constant 0 : index
    %c0_61 = arith.constant 0 : index
    %162 = vector.load %arg10[%c0_59, %c0_60, %c0_61] : memref<1x1x64xf32, #tpu.memory_space<vmem>>, vector<1x1x64xf32>
    %163 = vector.shape_cast %162 : vector<1x1x64xf32> to vector<1x64xf32>
    %164 = arith.mulf %161, %161 : vector<8x64xf32>
    %cst_62 = arith.constant dense<0.000000e+00> : vector<8xf32>
    %165 = vector.multi_reduction <add>, %164, %cst_62 [1] : vector<8x64xf32> to vector<8xf32>
    %166 = vector.shape_cast %165 : vector<8xf32> to vector<8x1xf32>
    %cst_63 = arith.constant 6.400000e+01 : f32
    %167 = vector.broadcast %cst_63 : f32 to vector<8x1xf32>
    %168 = arith.divf %166, %167 : vector<8x1xf32>
    %cst_64 = arith.constant 9.99999974E-6 : f32
    %169 = vector.broadcast %cst_64 : f32 to vector<8x1xf32>
    %170 = arith.addf %168, %169 : vector<8x1xf32>
    %171 = math.rsqrt %170 : vector<8x1xf32>
    %172 = vector.broadcast %171 : vector<8x1xf32> to vector<8x64xf32>
    %173 = arith.mulf %161, %172 : vector<8x64xf32>
    %174 = vector.broadcast %163 : vector<1x64xf32> to vector<8x64xf32>
    %175 = arith.mulf %173, %174 : vector<8x64xf32>
    %c0_65 = arith.constant 0 : index
    %c0_66 = arith.constant 0 : index
    %c0_67 = arith.constant 0 : index
    %176 = vector.load %arg11[%c0_65, %c0_66, %c0_67] : memref<1x64x128xf32, #tpu.memory_space<vmem>>, vector<1x64x128xf32>
    %177 = vector.shape_cast %176 : vector<1x64x128xf32> to vector<64x128xf32>
    %cst_68 = arith.constant dense<0.000000e+00> : vector<8x128xf32>
    %178 = tpu.matmul %175, %177, %cst_68 {dimension_numbers = #tpu.dot_dimension_numbers<[1], [0], [0], [1], [0, 0, 1, 1], [], []>} : vector<8x64xf32>, vector<64x128xf32>, vector<8x128xf32> -> vector<8x128xf32>
    %c0_69 = arith.constant 0 : index
    %c0_70 = arith.constant 0 : index
    %c0_71 = arith.constant 0 : index
    %179 = vector.load %arg12[%c0_69, %c0_70, %c0_71] : memref<1x64x128xf32, #tpu.memory_space<vmem>>, vector<1x64x128xf32>
    %180 = vector.shape_cast %179 : vector<1x64x128xf32> to vector<64x128xf32>
    %cst_72 = arith.constant dense<0.000000e+00> : vector<8x128xf32>
    %181 = tpu.matmul %175, %180, %cst_72 {dimension_numbers = #tpu.dot_dimension_numbers<[1], [0], [0], [1], [0, 0, 1, 1], [], []>} : vector<8x64xf32>, vector<64x128xf32>, vector<8x128xf32> -> vector<8x128xf32>
    %182 = arith.negf %178 : vector<8x128xf32>
    %183 = math.exp %182 : vector<8x128xf32>
    %cst_73 = arith.constant 1.000000e+00 : f32
    %184 = vector.broadcast %cst_73 : f32 to vector<8x128xf32>
    %185 = arith.addf %184, %183 : vector<8x128xf32>
    %186 = arith.divf %184, %185 : vector<8x128xf32>
    %187 = arith.mulf %178, %186 : vector<8x128xf32>
    %188 = arith.mulf %187, %181 : vector<8x128xf32>
    %c0_74 = arith.constant 0 : index
    %c0_75 = arith.constant 0 : index
    %c0_76 = arith.constant 0 : index
    %189 = vector.load %arg13[%c0_74, %c0_75, %c0_76] : memref<1x128x64xf32, #tpu.memory_space<vmem>>, vector<1x128x64xf32>
    %190 = vector.shape_cast %189 : vector<1x128x64xf32> to vector<128x64xf32>
    %cst_77 = arith.constant dense<0.000000e+00> : vector<8x64xf32>
    %191 = tpu.matmul %188, %190, %cst_77 {dimension_numbers = #tpu.dot_dimension_numbers<[1], [0], [0], [1], [0, 0, 1, 1], [], []>} : vector<8x128xf32>, vector<128x64xf32>, vector<8x64xf32> -> vector<8x64xf32>
    %192 = arith.addf %161, %191 : vector<8x64xf32>
    %c0_78 = arith.constant 0 : index
    %c0_79 = arith.constant 0 : index
    %193 = vector.load %arg17[%c0_78, %c0_79] : memref<8x64xf32, #tpu.memory_space<vmem>>, vector<8x64xf32>
    tpu.vector_store %arg17[%c0_78, %c0_79], %192 {strides = array<i32>} : memref<8x64xf32, #tpu.memory_space<vmem>>, vector<8x64xf32>,
    %c1_i32 = arith.constant 1 : i32
    %194 = arith.cmpi eq, %arg1, %c1_i32 : i32
    %195 = arith.extui %194 : i1 to i32
    %c0_i32_80 = arith.constant 0 : i32
    %196 = arith.cmpi ne, %195, %c0_i32_80 : i32
    scf.if %196 {
      %c0_81 = arith.constant 0 : index
      %c0_82 = arith.constant 0 : index
      %197 = vector.load %arg14[%c0_81, %c0_82] : memref<1x64xf32, #tpu.memory_space<vmem>>, vector<1x64xf32>
      %198 = arith.mulf %192, %192 : vector<8x64xf32>
      %cst_83 = arith.constant dense<0.000000e+00> : vector<8xf32>
      %199 = vector.multi_reduction <add>, %198, %cst_83 [1] : vector<8x64xf32> to vector<8xf32>
      %200 = vector.shape_cast %199 : vector<8xf32> to vector<8x1xf32>
      %cst_84 = arith.constant 6.400000e+01 : f32
      %201 = vector.broadcast %cst_84 : f32 to vector<8x1xf32>
      %202 = arith.divf %200, %201 : vector<8x1xf32>
      %cst_85 = arith.constant 9.99999974E-6 : f32
      %203 = vector.broadcast %cst_85 : f32 to vector<8x1xf32>
      %204 = arith.addf %202, %203 : vector<8x1xf32>
      %205 = math.rsqrt %204 : vector<8x1xf32>
      %206 = vector.broadcast %205 : vector<8x1xf32> to vector<8x64xf32>
      %207 = arith.mulf %192, %206 : vector<8x64xf32>
      %208 = vector.broadcast %197 : vector<1x64xf32> to vector<8x64xf32>
      %209 = arith.mulf %207, %208 : vector<8x64xf32>
      %c0_86 = arith.constant 0 : index
      %c0_87 = arith.constant 0 : index
      %210 = vector.load %arg15[%c0_86, %c0_87] : memref<128x64xf32, #tpu.memory_space<vmem>>, vector<128x64xf32>
      %cst_88 = arith.constant dense<0.000000e+00> : vector<8x128xf32>
      %211 = tpu.matmul %209, %210, %cst_88 {dimension_numbers = #tpu.dot_dimension_numbers<[1], [1], [0], [0], [0, 0, 1, 0], [], []>} : vector<8x64xf32>, vector<128x64xf32>, vector<8x128xf32> -> vector<8x128xf32>
      %c0_89 = arith.constant 0 : index
      %c0_90 = arith.constant 0 : index
      %c0_91 = arith.constant 0 : index
      %212 = vector.load %arg16[%c0_89, %c0_90, %c0_91] : memref<1x8x128xf32, #tpu.memory_space<vmem>>, vector<1x8x128xf32>
      %213 = vector.shape_cast %212 : vector<1x8x128xf32> to vector<8x128xf32>
      %214 = vector.shape_cast %211 : vector<8x128xf32> to vector<1x8x128xf32>
      tpu.vector_store %arg16[%c0_89, %c0_90, %c0_91], %214 {strides = array<i32>} : memref<1x8x128xf32, #tpu.memory_space<vmem>>, vector<1x8x128xf32>,
    } else {
    }
    return
  }
  func.func @transform_0(%arg0: i32, %arg1: i32) -> (i32, i32, i32) {
    %c0_i32 = arith.constant 0 : i32
    %c0_i32_0 = arith.constant 0 : i32
    %c0_i32_1 = arith.constant 0 : i32
    return %arg0, %c0_i32, %c0_i32_0 : i32, i32, i32
  }
  func.func @transform_1(%arg0: i32, %arg1: i32) -> (i32, i32) {
    %c0_i32 = arith.constant 0 : i32
    %c0_i32_0 = arith.constant 0 : i32
    %c0_i32_1 = arith.constant 0 : i32
    return %c0_i32, %c0_i32_0 : i32, i32
  }
  func.func @transform_2(%arg0: i32, %arg1: i32) -> (i32, i32) {
    %c0_i32 = arith.constant 0 : i32
    %c0_i32_0 = arith.constant 0 : i32
    %c0_i32_1 = arith.constant 0 : i32
    return %c0_i32, %c0_i32_0 : i32, i32
  }
  func.func @transform_3(%arg0: i32, %arg1: i32) -> (i32, i32, i32) {
    %c0_i32 = arith.constant 0 : i32
    %c0_i32_0 = arith.constant 0 : i32
    %c0_i32_1 = arith.constant 0 : i32
    return %arg1, %c0_i32, %c0_i32_0 : i32, i32, i32
  }
  func.func @transform_4(%arg0: i32, %arg1: i32) -> (i32, i32, i32) {
    %c0_i32 = arith.constant 0 : i32
    %c0_i32_0 = arith.constant 0 : i32
    %c0_i32_1 = arith.constant 0 : i32
    return %arg1, %c0_i32, %c0_i32_0 : i32, i32, i32
  }
  func.func @transform_5(%arg0: i32, %arg1: i32) -> (i32, i32, i32) {
    %c0_i32 = arith.constant 0 : i32
    %c0_i32_0 = arith.constant 0 : i32
    %c0_i32_1 = arith.constant 0 : i32
    return %arg1, %c0_i32, %c0_i32_0 : i32, i32, i32
  }
  func.func @transform_6(%arg0: i32, %arg1: i32) -> (i32, i32, i32) {
    %c0_i32 = arith.constant 0 : i32
    %c0_i32_0 = arith.constant 0 : i32
    %c0_i32_1 = arith.constant 0 : i32
    return %arg1, %c0_i32, %c0_i32_0 : i32, i32, i32
  }
  func.func @transform_7(%arg0: i32, %arg1: i32) -> (i32, i32, i32) {
    %c0_i32 = arith.constant 0 : i32
    %c0_i32_0 = arith.constant 0 : i32
    %c0_i32_1 = arith.constant 0 : i32
    return %arg1, %c0_i32, %c0_i32_0 : i32, i32, i32
  }
  func.func @transform_8(%arg0: i32, %arg1: i32) -> (i32, i32, i32) {
    %c0_i32 = arith.constant 0 : i32
    %c0_i32_0 = arith.constant 0 : i32
    %c0_i32_1 = arith.constant 0 : i32
    return %arg1, %c0_i32, %c0_i32_0 : i32, i32, i32
  }
  func.func @transform_9(%arg0: i32, %arg1: i32) -> (i32, i32, i32) {
    %c0_i32 = arith.constant 0 : i32
    %c0_i32_0 = arith.constant 0 : i32
    %c0_i32_1 = arith.constant 0 : i32
    return %arg1, %c0_i32, %c0_i32_0 : i32, i32, i32
  }
  func.func @transform_10(%arg0: i32, %arg1: i32) -> (i32, i32, i32) {
    %c0_i32 = arith.constant 0 : i32
    %c0_i32_0 = arith.constant 0 : i32
    %c0_i32_1 = arith.constant 0 : i32
    return %arg1, %c0_i32, %c0_i32_0 : i32, i32, i32
  }
  func.func @transform_11(%arg0: i32, %arg1: i32) -> (i32, i32, i32) {
    %c0_i32 = arith.constant 0 : i32
    %c0_i32_0 = arith.constant 0 : i32
    %c0_i32_1 = arith.constant 0 : i32
    return %arg1, %c0_i32, %c0_i32_0 : i32, i32, i32
  }
  func.func @transform_12(%arg0: i32, %arg1: i32) -> (i32, i32) {
    %c0_i32 = arith.constant 0 : i32
    %c0_i32_0 = arith.constant 0 : i32
    %c0_i32_1 = arith.constant 0 : i32
    return %c0_i32, %c0_i32_0 : i32, i32
  }
  func.func @transform_13(%arg0: i32, %arg1: i32) -> (i32, i32) {
    %c0_i32 = arith.constant 0 : i32
    %c0_i32_0 = arith.constant 0 : i32
    %c0_i32_1 = arith.constant 0 : i32
    return %c0_i32, %c0_i32_0 : i32, i32
  }
  func.func @transform_14(%arg0: i32, %arg1: i32) -> (i32, i32, i32) {
    %c0_i32 = arith.constant 0 : i32
    %c0_i32_0 = arith.constant 0 : i32
    %c0_i32_1 = arith.constant 0 : i32
    return %arg0, %c0_i32, %c0_i32_0 : i32, i32, i32
  }
}

</mosaic_0001>

<llo_original>
// kernel: language_model_forward.1
$region0: #{language_model_forward.1}
  #allocation0 [shape = 'u32[]', space=smem, size = 0x4, offset = 0x4, fixed_abs, tag = 'smem constant byte address 0x4 - core index']
  #allocation1 [shape = 'u32[144,128]{1,0:T(1,128)}', space=vmem, size = 0x12000, scoped, tag = 'internal scratch']
  #allocation2 [shape = 'f32[8,64]{1,0:T(8,128)}', space=vmem, size = 0x1000, scoped, tag = 'scratch operand']
  %s0 = inlined_call_operand.vmem [shape: f32[2,8,64], index: 0, kind: input, shape index: {}]
  %s1 = inlined_call_operand.vmem [shape: f32[8,16], index: 1, kind: input, shape index: {}]
  %s2 = inlined_call_operand.vmem [shape: f32[8,16], index: 2, kind: input, shape index: {}]
  %s3 = inlined_call_operand.vmem [shape: f32[2,1,64], index: 3, kind: input, shape index: {}]
  %s4 = inlined_call_operand.vmem [shape: f32[2,64,64], index: 4, kind: input, shape index: {}]
  %s5 = inlined_call_operand.vmem [shape: f32[2,64,32], index: 5, kind: input, shape index: {}]
  %s6 = inlined_call_operand.vmem [shape: f32[2,64,32], index: 6, kind: input, shape index: {}]
  %s7 = inlined_call_operand.vmem [shape: f32[2,64,64], index: 7, kind: input, shape index: {}]
  %s8 = inlined_call_operand.vmem [shape: f32[2,1,64], index: 8, kind: input, shape index: {}]
  %s9 = inlined_call_operand.vmem [shape: f32[2,64,128], index: 9, kind: input, shape index: {}]
  %s10 = inlined_call_operand.vmem [shape: f32[2,64,128], index: 10, kind: input, shape index: {}]
  %s11 = inlined_call_operand.vmem [shape: f32[2,128,64], index: 11, kind: input, shape index: {}]
  %s12 = inlined_call_operand.vmem [shape: f32[1,64], index: 12, kind: input, shape index: {}]
  %s13 = inlined_call_operand.vmem [shape: f32[128,64], index: 13, kind: input, shape index: {}]
  %s14 = inlined_call_operand.hbm [shape: f32[2,8,128], index: 14, kind: output, shape index: {}]
  %s15 = sld [smem:[#allocation0]]
  $region97: #{language_model_forward.1} parent=0
    _
  %s17 = ssub.s32 1, %s15
  %s18 = scalar_select 0, %s17, %s15
  $region1: #{language_model_forward.1} parent=0
    #allocation3 [shape = 'u8[8192]{0}', space=vmem, size = 0x2000, scoped, tag = 'output window, operand 0']
    #allocation4 [shape = 's32[2]{0}', space=sflag, size = 0x8, scoped, tag = 'scoped memory for language_model_forward.1']
    %19 = vsyncpa [#allocation4], 0
    %s20 = scalar_lea.sflag [#allocation4], 1
    %21 = vsyncpa %s20, 0
    loop: start=0, step=1, limit=6
    $region2: #{language_model_forward.1} parent=1 // loop_pre_header
      _
    $region3: #{language_model_forward.1} parent=1 // loop_header
      %s23 = sphi 0, %s27
      %p24 = scmp.ge.s32.totalorder %s23, 6
      %s30 = sphi 0, %s42
      %s31 = sphi 0, %s38
      %s32 = sphi 0, %s30
      %s33 = sphi 0, %s31
      %s34 = sphi 0, %s32
      %s35 = sphi 0, %s33
      %s45 = sphi 0, %s47
      %s48 = sphi 0, %s45
      %s49 = sphi 0, %s48
      %s65 = sphi 0, %s49
      %s69 = sphi 0, %s69
      %s71 = sphi 0, %s69
      %s72 = sphi 0, %s71
      %s86 = sphi 0, %s72
      %s90 = sphi 0, %s90
      %s92 = sphi 0, %s90
      %s93 = sphi 0, %s92
      %s107 = sphi 0, %s93
      %s113 = sphi 0, %s115
      %s116 = sphi 0, %s113
      %s117 = sphi 0, %s116
      %s133 = sphi 0, %s117
      %s139 = sphi 0, %s141
      %s142 = sphi 0, %s139
      %s143 = sphi 0, %s142
      %s159 = sphi 0, %s143
      %s165 = sphi 0, %s167
      %s168 = sphi 0, %s165
      %s169 = sphi 0, %s168
      %s185 = sphi 0, %s169
      %s191 = sphi 0, %s193
      %s194 = sphi 0, %s191
      %s195 = sphi 0, %s194
      %s211 = sphi 0, %s195
      %s217 = sphi 0, %s219
      %s220 = sphi 0, %s217
      %s221 = sphi 0, %s220
      %s237 = sphi 0, %s221
      %s243 = sphi 0, %s245
      %s246 = sphi 0, %s243
      %s247 = sphi 0, %s246
      %s263 = sphi 0, %s247
      %s269 = sphi 0, %s271
      %s272 = sphi 0, %s269
      %s273 = sphi 0, %s272
      %s289 = sphi 0, %s273
      %s295 = sphi 0, %s297
      %s298 = sphi 0, %s295
      %s299 = sphi 0, %s298
      %s315 = sphi 0, %s299
      %s321 = sphi 0, %s323
      %s324 = sphi 0, %s321
      %s325 = sphi 0, %s324
      %s341 = sphi 0, %s325
      %s345 = sphi 0, %s345
      %s347 = sphi 0, %s345
      %s348 = sphi 0, %s347
      %s362 = sphi 0, %s348
      %s366 = sphi 0, %s366
      %s368 = sphi 0, %s366
      %s369 = sphi 0, %s368
      %s383 = sphi 0, %s369
      %s389 = sphi 0, %s391
      %s392 = sphi 0, %s389
      %s393 = sphi 0, %s392
      %s409 = sphi 0, %s393
    $region4: #{language_model_forward.1} parent=1 // loop_header_branch
      %26 = sbr.rel (%p24) target = $region8
    $region5: #{language_model_forward.1} parent=1 // loop_body
      %s28 = ssub.s32 %s23, 1
      %s29 = ssub.s32 %s23, 2
      %s36 = sadd.s32 1, %s31
      %p37 = scmp.ge.s32.totalorder %s36, 2
      %s38 = scalar_select %p37, 0, %s36
      %s39 = sadd.s32 1, %s30
      %s40 = scalar_select %p37, %s39, %s30
      %p41 = scmp.ge.s32.totalorder %s40, 2
      %s42 = scalar_select %p41, 0, %s40
      %s43 = ssub.s32 %s30, %s42
      %p44 = scmp.eq.s32.totalorder %s43, 0
      %s46 = sadd.s32 %s45, 1
      %s47 = scalar_select %p44, %s45, %s46
      %p50 = pneg %p44
      %p51 = scmp.eq.s32.totalorder %s23, 3
      %p52 = por %p50, %p51
      %p53 = scmp.ne.s32.totalorder %s45, %s48
      %p54 = scmp.eq.s32.totalorder %s23, 0
      %p55 = por %p53, %p54
      %p56 = scmp.ne.s32.totalorder %s45, %s48
      %p57 = scmp.eq.s32.totalorder %s28, 3
      %p58 = por %p56, %p57
      %p59 = scmp.ne.s32.totalorder %s48, %s49
      %p60 = scmp.eq.s32.totalorder %s28, 0
      %p61 = por %p59, %p60
      %p62 = scmp.ne.s32.totalorder %s48, %s49
      %p63 = scmp.eq.s32.totalorder %s29, 3
      %p64 = por %p62, %p63
      %p66 = scmp.ne.s32.totalorder %s49, %s65
      %p67 = scmp.eq.s32.totalorder %s29, 0
      %p68 = por %p66, %p67
      %s70 = sadd.s32 %s69, 1
      %p73 = scmp.eq.s32.totalorder %s23, 3
      %p74 = scmp.ne.s32.totalorder %s69, %s71
      %p75 = scmp.eq.s32.totalorder %s23, 0
      %p76 = por %p74, %p75
      %p77 = scmp.ne.s32.totalorder %s69, %s71
      %p78 = scmp.eq.s32.totalorder %s28, 3
      %p79 = por %p77, %p78
      %p80 = scmp.ne.s32.totalorder %s71, %s72
      %p81 = scmp.eq.s32.totalorder %s28, 0
      %p82 = por %p80, %p81
      %p83 = scmp.ne.s32.totalorder %s71, %s72
      %p84 = scmp.eq.s32.totalorder %s29, 3
      %p85 = por %p83, %p84
      %p87 = scmp.ne.s32.totalorder %s72, %s86
      %p88 = scmp.eq.s32.totalorder %s29, 0
      %p89 = por %p87, %p88
      %s91 = sadd.s32 %s90, 1
      %p94 = scmp.eq.s32.totalorder %s23, 3
      %p95 = scmp.ne.s32.totalorder %s90, %s92
      %p96 = scmp.eq.s32.totalorder %s23, 0
      %p97 = por %p95, %p96
      %p98 = scmp.ne.s32.totalorder %s90, %s92
      %p99 = scmp.eq.s32.totalorder %s28, 3
      %p100 = por %p98, %p99
      %p101 = scmp.ne.s32.totalorder %s92, %s93
      %p102 = scmp.eq.s32.totalorder %s28, 0
      %p103 = por %p101, %p102
      %p104 = scmp.ne.s32.totalorder %s92, %s93
      %p105 = scmp.eq.s32.totalorder %s29, 3
      %p106 = por %p104, %p105
      %p108 = scmp.ne.s32.totalorder %s93, %s107
      %p109 = scmp.eq.s32.totalorder %s29, 0
      %p110 = por %p108, %p109
      %s111 = ssub.s32 %s31, %s38
      %p112 = scmp.eq.s32.totalorder %s111, 0
      %s114 = sadd.s32 %s113, 1
      %s115 = scalar_select %p112, %s113, %s114
      %p118 = pneg %p112
      %p119 = scmp.eq.s32.totalorder %s23, 3
      %p120 = por %p118, %p119
      %p121 = scmp.ne.s32.totalorder %s113, %s116
      %p122 = scmp.eq.s32.totalorder %s23, 0
      %p123 = por %p121, %p122
      %p124 = scmp.ne.s32.totalorder %s113, %s116
      %p125 = scmp.eq.s32.totalorder %s28, 3
      %p126 = por %p124, %p125
      %p127 = scmp.ne.s32.totalorder %s116, %s117
      %p128 = scmp.eq.s32.totalorder %s28, 0
      %p129 = por %p127, %p128
      %p130 = scmp.ne.s32.totalorder %s116, %s117
      %p131 = scmp.eq.s32.totalorder %s29, 3
      %p132 = por %p130, %p131
      %p134 = scmp.ne.s32.totalorder %s117, %s133
      %p135 = scmp.eq.s32.totalorder %s29, 0
      %p136 = por %p134, %p135
      %s137 = ssub.s32 %s31, %s38
      %p138 = scmp.eq.s32.totalorder %s137, 0
      %s140 = sadd.s32 %s139, 1
      %s141 = scalar_select %p138, %s139, %s140
      %p144 = pneg %p138
      %p145 = scmp.eq.s32.totalorder %s23, 3
      %p146 = por %p144, %p145
      %p147 = scmp.ne.s32.totalorder %s139, %s142
      %p148 = scmp.eq.s32.totalorder %s23, 0
      %p149 = por %p147, %p148
      %p150 = scmp.ne.s32.totalorder %s139, %s142
      %p151 = scmp.eq.s32.totalorder %s28, 3
      %p152 = por %p150, %p151
      %p153 = scmp.ne.s32.totalorder %s142, %s143
      %p154 = scmp.eq.s32.totalorder %s28, 0
      %p155 = por %p153, %p154
      %p156 = scmp.ne.s32.totalorder %s142, %s143
      %p157 = scmp.eq.s32.totalorder %s29, 3
      %p158 = por %p156, %p157
      %p160 = scmp.ne.s32.totalorder %s143, %s159
      %p161 = scmp.eq.s32.totalorder %s29, 0
      %p162 = por %p160, %p161
      %s163 = ssub.s32 %s31, %s38
      %p164 = scmp.eq.s32.totalorder %s163, 0
      %s166 = sadd.s32 %s165, 1
      %s167 = scalar_select %p164, %s165, %s166
      %p170 = pneg %p164
      %p171 = scmp.eq.s32.totalorder %s23, 3
      %p172 = por %p170, %p171
      %p173 = scmp.ne.s32.totalorder %s165, %s168
      %p174 = scmp.eq.s32.totalorder %s23, 0
      %p175 = por %p173, %p174
      %p176 = scmp.ne.s32.totalorder %s165, %s168
      %p177 = scmp.eq.s32.totalorder %s28, 3
      %p178 = por %p176, %p177
      %p179 = scmp.ne.s32.totalorder %s168, %s169
      %p180 = scmp.eq.s32.totalorder %s28, 0
      %p181 = por %p179, %p180
      %p182 = scmp.ne.s32.totalorder %s168, %s169
      %p183 = scmp.eq.s32.totalorder %s29, 3
      %p184 = por %p182, %p183
      %p186 = scmp.ne.s32.totalorder %s169, %s185
      %p187 = scmp.eq.s32.totalorder %s29, 0
      %p188 = por %p186, %p187
      %s189 = ssub.s32 %s31, %s38
      %p190 = scmp.eq.s32.totalorder %s189, 0
      %s192 = sadd.s32 %s191, 1
      %s193 = scalar_select %p190, %s191, %s192
      %p196 = pneg %p190
      %p197 = scmp.eq.s32.totalorder %s23, 3
      %p198 = por %p196, %p197
      %p199 = scmp.ne.s32.totalorder %s191, %s194
      %p200 = scmp.eq.s32.totalorder %s23, 0
      %p201 = por %p199, %p200
      %p202 = scmp.ne.s32.totalorder %s191, %s194
      %p203 = scmp.eq.s32.totalorder %s28, 3
      %p204 = por %p202, %p203
      %p205 = scmp.ne.s32.totalorder %s194, %s195
      %p206 = scmp.eq.s32.totalorder %s28, 0
      %p207 = por %p205, %p206
      %p208 = scmp.ne.s32.totalorder %s194, %s195
      %p209 = scmp.eq.s32.totalorder %s29, 3
      %p210 = por %p208, %p209
      %p212 = scmp.ne.s32.totalorder %s195, %s211
      %p213 = scmp.eq.s32.totalorder %s29, 0
      %p214 = por %p212, %p213
      %s215 = ssub.s32 %s31, %s38
      %p216 = scmp.eq.s32.totalorder %s215, 0
      %s218 = sadd.s32 %s217, 1
      %s219 = scalar_select %p216, %s217, %s218
      %p222 = pneg %p216
      %p223 = scmp.eq.s32.totalorder %s23, 3
      %p224 = por %p222, %p223
      %p225 = scmp.ne.s32.totalorder %s217, %s220
      %p226 = scmp.eq.s32.totalorder %s23, 0
      %p227 = por %p225, %p226
      %p228 = scmp.ne.s32.totalorder %s217, %s220
      %p229 = scmp.eq.s32.totalorder %s28, 3
      %p230 = por %p228, %p229
      %p231 = scmp.ne.s32.totalorder %s220, %s221
      %p232 = scmp.eq.s32.totalorder %s28, 0
      %p233 = por %p231, %p232
      %p234 = scmp.ne.s32.totalorder %s220, %s221
      %p235 = scmp.eq.s32.totalorder %s29, 3
      %p236 = por %p234, %p235
      %p238 = scmp.ne.s32.totalorder %s221, %s237
      %p239 = scmp.eq.s32.totalorder %s29, 0
      %p240 = por %p238, %p239
      %s241 = ssub.s32 %s31, %s38
      %p242 = scmp.eq.s32.totalorder %s241, 0
      %s244 = sadd.s32 %s243, 1
      %s245 = scalar_select %p242, %s243, %s244
      %p248 = pneg %p242
      %p249 = scmp.eq.s32.totalorder %s23, 3
      %p250 = por %p248, %p249
      %p251 = scmp.ne.s32.totalorder %s243, %s246
      %p252 = scmp.eq.s32.totalorder %s23, 0
      %p253 = por %p251, %p252
      %p254 = scmp.ne.s32.totalorder %s243, %s246
      %p255 = scmp.eq.s32.totalorder %s28, 3
      %p256 = por %p254, %p255
      %p257 = scmp.ne.s32.totalorder %s246, %s247
      %p258 = scmp.eq.s32.totalorder %s28, 0
      %p259 = por %p257, %p258
      %p260 = scmp.ne.s32.totalorder %s246, %s247
      %p261 = scmp.eq.s32.totalorder %s29, 3
      %p262 = por %p260, %p261
      %p264 = scmp.ne.s32.totalorder %s247, %s263
      %p265 = scmp.eq.s32.totalorder %s29, 0
      %p266 = por %p264, %p265
      %s267 = ssub.s32 %s31, %s38
      %p268 = scmp.eq.s32.totalorder %s267, 0
      %s270 = sadd.s32 %s269, 1
      %s271 = scalar_select %p268, %s269, %s270
      %p274 = pneg %p268
      %p275 = scmp.eq.s32.totalorder %s23, 3
      %p276 = por %p274, %p275
      %p277 = scmp.ne.s32.totalorder %s269, %s272
      %p278 = scmp.eq.s32.totalorder %s23, 0
      %p279 = por %p277, %p278
      %p280 = scmp.ne.s32.totalorder %s269, %s272
      %p281 = scmp.eq.s32.totalorder %s28, 3
      %p282 = por %p280, %p281
      %p283 = scmp.ne.s32.totalorder %s272, %s273
      %p284 = scmp.eq.s32.totalorder %s28, 0
      %p285 = por %p283, %p284
      %p286 = scmp.ne.s32.totalorder %s272, %s273
      %p287 = scmp.eq.s32.totalorder %s29, 3
      %p288 = por %p286, %p287
      %p290 = scmp.ne.s32.totalorder %s273, %s289
      %p291 = scmp.eq.s32.totalorder %s29, 0
      %p292 = por %p290, %p291
      %s293 = ssub.s32 %s31, %s38
      %p294 = scmp.eq.s32.totalorder %s293, 0
      %s296 = sadd.s32 %s295, 1
      %s297 = scalar_select %p294, %s295, %s296
      %p300 = pneg %p294
      %p301 = scmp.eq.s32.totalorder %s23, 3
      %p302 = por %p300, %p301
      %p303 = scmp.ne.s32.totalorder %s295, %s298
      %p304 = scmp.eq.s32.totalorder %s23, 0
      %p305 = por %p303, %p304
      %p306 = scmp.ne.s32.totalorder %s295, %s298
      %p307 = scmp.eq.s32.totalorder %s28, 3
      %p308 = por %p306, %p307
      %p309 = scmp.ne.s32.totalorder %s298, %s299
      %p310 = scmp.eq.s32.totalorder %s28, 0
      %p311 = por %p309, %p310
      %p312 = scmp.ne.s32.totalorder %s298, %s299
      %p313 = scmp.eq.s32.totalorder %s29, 3
      %p314 = por %p312, %p313
      %p316 = scmp.ne.s32.totalorder %s299, %s315
      %p317 = scmp.eq.s32.totalorder %s29, 0
      %p318 = por %p316, %p317
      %s319 = ssub.s32 %s31, %s38
      %p320 = scmp.eq.s32.totalorder %s319, 0
      %s322 = sadd.s32 %s321, 1
      %s323 = scalar_select %p320, %s321, %s322
      %p326 = pneg %p320
      %p327 = scmp.eq.s32.totalorder %s23, 3
      %p328 = por %p326, %p327
      %p329 = scmp.ne.s32.totalorder %s321, %s324
      %p330 = scmp.eq.s32.totalorder %s23, 0
      %p331 = por %p329, %p330
      %p332 = scmp.ne.s32.totalorder %s321, %s324
      %p333 = scmp.eq.s32.totalorder %s28, 3
      %p334 = por %p332, %p333
      %p335 = scmp.ne.s32.totalorder %s324, %s325
      %p336 = scmp.eq.s32.totalorder %s28, 0
      %p337 = por %p335, %p336
      %p338 = scmp.ne.s32.totalorder %s324, %s325
      %p339 = scmp.eq.s32.totalorder %s29, 3
      %p340 = por %p338, %p339
      %p342 = scmp.ne.s32.totalorder %s325, %s341
      %p343 = scmp.eq.s32.totalorder %s29, 0
      %p344 = por %p342, %p343
      %s346 = sadd.s32 %s345, 1
      %p349 = scmp.eq.s32.totalorder %s23, 3
      %p350 = scmp.ne.s32.totalorder %s345, %s347
      %p351 = scmp.eq.s32.totalorder %s23, 0
      %p352 = por %p350, %p351
      %p353 = scmp.ne.s32.totalorder %s345, %s347
      %p354 = scmp.eq.s32.totalorder %s28, 3
      %p355 = por %p353, %p354
      %p356 = scmp.ne.s32.totalorder %s347, %s348
      %p357 = scmp.eq.s32.totalorder %s28, 0
      %p358 = por %p356, %p357
      %p359 = scmp.ne.s32.totalorder %s347, %s348
      %p360 = scmp.eq.s32.totalorder %s29, 3
      %p361 = por %p359, %p360
      %p363 = scmp.ne.s32.totalorder %s348, %s362
      %p364 = scmp.eq.s32.totalorder %s29, 0
      %p365 = por %p363, %p364
      %s367 = sadd.s32 %s366, 1
      %p370 = scmp.eq.s32.totalorder %s23, 3
      %p371 = scmp.ne.s32.totalorder %s366, %s368
      %p372 = scmp.eq.s32.totalorder %s23, 0
      %p373 = por %p371, %p372
      %p374 = scmp.ne.s32.totalorder %s366, %s368
      %p375 = scmp.eq.s32.totalorder %s28, 3
      %p376 = por %p374, %p375
      %p377 = scmp.ne.s32.totalorder %s368, %s369
      %p378 = scmp.eq.s32.totalorder %s28, 0
      %p379 = por %p377, %p378
      %p380 = scmp.ne.s32.totalorder %s368, %s369
      %p381 = scmp.eq.s32.totalorder %s29, 3
      %p382 = por %p380, %p381
      %p384 = scmp.ne.s32.totalorder %s369, %s383
      %p385 = scmp.eq.s32.totalorder %s29, 0
      %p386 = por %p384, %p385
      %s387 = ssub.s32 %s30, %s42
      %p388 = scmp.eq.s32.totalorder %s387, 0
      %s390 = sadd.s32 %s389, 1
      %s391 = scalar_select %p388, %s389, %s390
      %p394 = pneg %p388
      %p395 = scmp.eq.s32.totalorder %s23, 3
      %p396 = por %p394, %p395
      %p397 = scmp.ne.s32.totalorder %s389, %s392
      %p398 = scmp.eq.s32.totalorder %s23, 0
      %p399 = por %p397, %p398
      %p400 = scmp.ne.s32.totalorder %s389, %s392
      %p401 = scmp.eq.s32.totalorder %s28, 3
      %p402 = por %p400, %p401
      %p403 = scmp.ne.s32.totalorder %s392, %s393
      %p404 = scmp.eq.s32.totalorder %s28, 0
      %p405 = por %p403, %p404
      %p406 = scmp.ne.s32.totalorder %s392, %s393
      %p407 = scmp.eq.s32.totalorder %s29, 3
      %p408 = por %p406, %p407
      %p410 = scmp.ne.s32.totalorder %s393, %s409
      %p411 = scmp.eq.s32.totalorder %s29, 0
      %p412 = por %p410, %p411
      %p413 = scmp.le.s32.totalorder 1, %s23
      %p414 = scmp.lt.s32.totalorder %s23, 5
      %p415 = pnand %p413, %p414
      %p416 = pneg %p415
      // Predicated region
      $region9: #{language_model_forward.1} parent=5 // pred_check
        _
      $region10: #{language_model_forward.1} parent=5 // pred_check_branch
        %418 = sbr.rel (%p415) target = $region12
      $region11: #{language_model_forward.1} parent=5 // pred_region
        %s419 = ssub.s32 %s23, 1
        // Predicated region
        $region13: #{language_model_forward.1} parent=11 // pred_check
          %p420 = pneg %p82
        $region14: #{language_model_forward.1} parent=11 // pred_check_branch
          %422 = sbr.rel (%p420) target = $region16
        $region15: #{language_model_forward.1} parent=11 // pred_region
          _
        $region16: #{language_model_forward.1} parent=11 // pred_fallthru
          _
        // Predicated region
        $region17: #{language_model_forward.1} parent=11 // pred_check
          %p423 = pneg %p103
        $region18: #{language_model_forward.1} parent=11 // pred_check_branch
          %425 = sbr.rel (%p423) target = $region20
        $region19: #{language_model_forward.1} parent=11 // pred_region
          _
        $region20: #{language_model_forward.1} parent=11 // pred_fallthru
          _
        // Predicated region
        $region21: #{language_model_forward.1} parent=11 // pred_check
          %p426 = pneg %p358
        $region22: #{language_model_forward.1} parent=11 // pred_check_branch
          %428 = sbr.rel (%p426) target = $region24
        $region23: #{language_model_forward.1} parent=11 // pred_region
          _
        $region24: #{language_model_forward.1} parent=11 // pred_fallthru
          _
        // Predicated region
        $region25: #{language_model_forward.1} parent=11 // pred_check
          %p429 = pneg %p379
        $region26: #{language_model_forward.1} parent=11 // pred_check_branch
          %431 = sbr.rel (%p429) target = $region28
        $region27: #{language_model_forward.1} parent=11 // pred_region
          _
        $region28: #{language_model_forward.1} parent=11 // pred_fallthru
          _
      $region12: #{language_model_forward.1} parent=5 // pred_fallthru
        _
      %p432 = scmp.lt.s32.totalorder %s23, 4
      // Predicated region
      $region29: #{language_model_forward.1} parent=5 // pred_check
        %p433 = pneg %p432
      $region30: #{language_model_forward.1} parent=5 // pred_check_branch
        %435 = sbr.rel (%p433) target = $region32
      $region31: #{language_model_forward.1} parent=5 // pred_region
        // Predicated region
        $region33: #{language_model_forward.1} parent=31 // pred_check
          %p436 = pneg %p55
        $region34: #{language_model_forward.1} parent=31 // pred_check_branch
          %438 = sbr.rel (%p436) target = $region36
        $region35: #{language_model_forward.1} parent=31 // pred_region
          %p439 = scmp.lt.s32.totalorder %s30, 1
          %s440 = scalar_select %p439, %s30, 1
          %s441 = smul.addr %s440, 8
          %s442 = scalar_lea.vmem %s0, %s441
        $region36: #{language_model_forward.1} parent=31 // pred_fallthru
          _
        // Predicated region
        $region37: #{language_model_forward.1} parent=31 // pred_check
          %p443 = pneg %p123
        $region38: #{language_model_forward.1} parent=31 // pred_check_branch
          %445 = sbr.rel (%p443) target = $region40
        $region39: #{language_model_forward.1} parent=31 // pred_region
          %p446 = scmp.lt.s32.totalorder %s31, 1
          %s447 = scalar_select %p446, %s31, 1
          %s448 = scalar_lea.vmem %s3, %s447
        $region40: #{language_model_forward.1} parent=31 // pred_fallthru
          _
        // Predicated region
        $region41: #{language_model_forward.1} parent=31 // pred_check
          %p449 = pneg %p149
        $region42: #{language_model_forward.1} parent=31 // pred_check_branch
          %451 = sbr.rel (%p449) target = $region44
        $region43: #{language_model_forward.1} parent=31 // pred_region
          %p452 = scmp.lt.s32.totalorder %s31, 1
          %s453 = scalar_select %p452, %s31, 1
          %s454 = smul.addr %s453, 8
          %s455 = smul.addr %s454, 8
          %s456 = scalar_lea.vmem %s4, %s455
        $region44: #{language_model_forward.1} parent=31 // pred_fallthru
          _
        // Predicated region
        $region45: #{language_model_forward.1} parent=31 // pred_check
          %p457 = pneg %p175
        $region46: #{language_model_forward.1} parent=31 // pred_check_branch
          %459 = sbr.rel (%p457) target = $region48
        $region47: #{language_model_forward.1} parent=31 // pred_region
          %p460 = scmp.lt.s32.totalorder %s31, 1
          %s461 = scalar_select %p460, %s31, 1
          %s462 = smul.addr %s461, 8
          %s463 = smul.addr %s462, 8
          %s464 = scalar_lea.vmem %s5, %s463
        $region48: #{language_model_forward.1} parent=31 // pred_fallthru
          _
        // Predicated region
        $region49: #{language_model_forward.1} parent=31 // pred_check
          %p465 = pneg %p201
        $region50: #{language_model_forward.1} parent=31 // pred_check_branch
          %467 = sbr.rel (%p465) target = $region52
        $region51: #{language_model_forward.1} parent=31 // pred_region
          %p468 = scmp.lt.s32.totalorder %s31, 1
          %s469 = scalar_select %p468, %s31, 1
          %s470 = smul.addr %s469, 8
          %s471 = smul.addr %s470, 8
          %s472 = scalar_lea.vmem %s6, %s471
        $region52: #{language_model_forward.1} parent=31 // pred_fallthru
          _
        // Predicated region
        $region53: #{language_model_forward.1} parent=31 // pred_check
          %p473 = pneg %p227
        $region54: #{language_model_forward.1} parent=31 // pred_check_branch
          %475 = sbr.rel (%p473) target = $region56
        $region55: #{language_model_forward.1} parent=31 // pred_region
          %p476 = scmp.lt.s32.totalorder %s31, 1
          %s477 = scalar_select %p476, %s31, 1
          %s478 = smul.addr %s477, 8
          %s479 = smul.addr %s478, 8
          %s480 = scalar_lea.vmem %s7, %s479
        $region56: #{language_model_forward.1} parent=31 // pred_fallthru
          _
        // Predicated region
        $region57: #{language_model_forward.1} parent=31 // pred_check
          %p481 = pneg %p253
        $region58: #{language_model_forward.1} parent=31 // pred_check_branch
          %483 = sbr.rel (%p481) target = $region60
        $region59: #{language_model_forward.1} parent=31 // pred_region
          %p484 = scmp.lt.s32.totalorder %s31, 1
          %s485 = scalar_select %p484, %s31, 1
          %s486 = scalar_lea.vmem %s8, %s485
        $region60: #{language_model_forward.1} parent=31 // pred_fallthru
          _
        // Predicated region
        $region61: #{language_model_forward.1} parent=31 // pred_check
          %p487 = pneg %p279
        $region62: #{language_model_forward.1} parent=31 // pred_check_branch
          %489 = sbr.rel (%p487) target = $region64
        $region63: #{language_model_forward.1} parent=31 // pred_region
          %p490 = scmp.lt.s32.totalorder %s31, 1
          %s491 = scalar_select %p490, %s31, 1
          %s492 = smul.addr %s491, 8
          %s493 = smul.addr %s492, 8
          %s494 = scalar_lea.vmem %s9, %s493
        $region64: #{language_model_forward.1} parent=31 // pred_fallthru
          _
        // Predicated region
        $region65: #{language_model_forward.1} parent=31 // pred_check
          %p495 = pneg %p305
        $region66: #{language_model_forward.1} parent=31 // pred_check_branch
          %497 = sbr.rel (%p495) target = $region68
        $region67: #{language_model_forward.1} parent=31 // pred_region
          %p498 = scmp.lt.s32.totalorder %s31, 1
          %s499 = scalar_select %p498, %s31, 1
          %s500 = smul.addr %s499, 8
          %s501 = smul.addr %s500, 8
          %s502 = scalar_lea.vmem %s10, %s501
        $region68: #{language_model_forward.1} parent=31 // pred_fallthru
          _
        // Predicated region
        $region69: #{language_model_forward.1} parent=31 // pred_check
          %p503 = pneg %p331
        $region70: #{language_model_forward.1} parent=31 // pred_check_branch
          %505 = sbr.rel (%p503) target = $region72
        $region71: #{language_model_forward.1} parent=31 // pred_region
          %p506 = scmp.lt.s32.totalorder %s31, 1
          %s507 = scalar_select %p506, %s31, 1
          %s508 = smul.addr %s507, 16
          %s509 = smul.addr %s508, 8
          %s510 = scalar_lea.vmem %s11, %s509
        $region72: #{language_model_forward.1} parent=31 // pred_fallthru
          _
      $region32: #{language_model_forward.1} parent=5 // pred_fallthru
        _
      %p511 = scmp.le.s32.totalorder 1, %s23
      %p512 = scmp.lt.s32.totalorder %s23, 5
      %p513 = pnand %p511, %p512
      %p514 = pneg %p513
      // Predicated region
      $region73: #{language_model_forward.1} parent=5 // pred_check
        _
      $region74: #{language_model_forward.1} parent=5 // pred_check_branch
        %516 = sbr.rel (%p513) target = $region76
      $region75: #{language_model_forward.1} parent=5 // pred_region
        %s517 = ssub.s32 %s23, 1
        %p518 = scmp.lt.s32.totalorder %s32, 1
        %s519 = scalar_select %p518, %s32, 1
        %s520 = smul.addr %s519, 8
        %s521 = scalar_lea.vmem %s0, %s520
        %p522 = pneg %p61
        %p523 = pneg %p58
        %p524 = pneg %p82
        %p525 = pneg %p79
        %p526 = pneg %p103
        %p527 = pneg %p100
        %p528 = scmp.lt.s32.totalorder %s33, 1
        %s529 = scalar_select %p528, %s33, 1
        %s530 = scalar_lea.vmem %s3, %s529
        %p531 = pneg %p129
        %p532 = pneg %p126
        %p533 = scmp.lt.s32.totalorder %s33, 1
        %s534 = scalar_select %p533, %s33, 1
        %s535 = smul.addr %s534, 8
        %s536 = smul.addr %s535, 8
        %s537 = scalar_lea.vmem %s4, %s536
        %p538 = pneg %p155
        %p539 = pneg %p152
        %p540 = scmp.lt.s32.totalorder %s33, 1
        %s541 = scalar_select %p540, %s33, 1
        %s542 = smul.addr %s541, 8
        %s543 = smul.addr %s542, 8
        %s544 = scalar_lea.vmem %s5, %s543
        %p545 = pneg %p181
        %p546 = pneg %p178
        %p547 = scmp.lt.s32.totalorder %s33, 1
        %s548 = scalar_select %p547, %s33, 1
        %s549 = smul.addr %s548, 8
        %s550 = smul.addr %s549, 8
        %s551 = scalar_lea.vmem %s6, %s550
        %p552 = pneg %p207
        %p553 = pneg %p204
        %p554 = scmp.lt.s32.totalorder %s33, 1
        %s555 = scalar_select %p554, %s33, 1
        %s556 = smul.addr %s555, 8
        %s557 = smul.addr %s556, 8
        %s558 = scalar_lea.vmem %s7, %s557
        %p559 = pneg %p233
        %p560 = pneg %p230
        %p561 = scmp.lt.s32.totalorder %s33, 1
        %s562 = scalar_select %p561, %s33, 1
        %s563 = scalar_lea.vmem %s8, %s562
        %p564 = pneg %p259
        %p565 = pneg %p256
        %p566 = scmp.lt.s32.totalorder %s33, 1
        %s567 = scalar_select %p566, %s33, 1
        %s568 = smul.addr %s567, 8
        %s569 = smul.addr %s568, 8
        %s570 = scalar_lea.vmem %s9, %s569
        %p571 = pneg %p285
        %p572 = pneg %p282
        %p573 = scmp.lt.s32.totalorder %s33, 1
        %s574 = scalar_select %p573, %s33, 1
        %s575 = smul.addr %s574, 8
        %s576 = smul.addr %s575, 8
        %s577 = scalar_lea.vmem %s10, %s576
        %p578 = pneg %p311
        %p579 = pneg %p308
        %p580 = scmp.lt.s32.totalorder %s33, 1
        %s581 = scalar_select %p580, %s33, 1
        %s582 = smul.addr %s581, 16
        %s583 = smul.addr %s582, 8
        %s584 = scalar_lea.vmem %s11, %s583
        %p585 = pneg %p337
        %p586 = pneg %p334
        %p587 = pneg %p358
        %p588 = pneg %p355
        %p589 = pneg %p379
        %p590 = pneg %p376
        %p591 = pneg %p405
        %p592 = pneg %p402
        %s593 = sand.u32 %s392, 1
        %s594 = scalar_lea.sflag [#allocation4], %s593
        %s595 = sand.u32 %s392, 1
        %s596 = smul.addr %s595, 8
        %s597 = scalar_lea.vmem [#allocation3], %s596
        %p598 = scmp.lt.s32.totalorder %s32, 1
        %s599 = scalar_select %p598, %s32, 1
        %s600 = smul.addr %s599, 8
        %s601 = scalar_lea.vmem %s0, %s600
        %p602 = scmp.lt.s32.totalorder %s33, 1
        %s603 = scalar_select %p602, %s33, 1
        %s604 = scalar_lea.vmem %s3, %s603
        %p605 = scmp.lt.s32.totalorder %s33, 1
        %s606 = scalar_select %p605, %s33, 1
        %s607 = smul.addr %s606, 8
        %s608 = smul.addr %s607, 8
        %s609 = scalar_lea.vmem %s4, %s608
        %p610 = scmp.lt.s32.totalorder %s33, 1
        %s611 = scalar_select %p610, %s33, 1
        %s612 = smul.addr %s611, 8
        %s613 = smul.addr %s612, 8
        %s614 = scalar_lea.vmem %s5, %s613
        %p615 = scmp.lt.s32.totalorder %s33, 1
        %s616 = scalar_select %p615, %s33, 1
        %s617 = smul.addr %s616, 8
        %s618 = smul.addr %s617, 8
        %s619 = scalar_lea.vmem %s6, %s618
        %p620 = scmp.lt.s32.totalorder %s33, 1
        %s621 = scalar_select %p620, %s33, 1
        %s622 = smul.addr %s621, 8
        %s623 = smul.addr %s622, 8
        %s624 = scalar_lea.vmem %s7, %s623
        %p625 = scmp.lt.s32.totalorder %s33, 1
        %s626 = scalar_select %p625, %s33, 1
        %s627 = scalar_lea.vmem %s8, %s626
        %p628 = scmp.lt.s32.totalorder %s33, 1
        %s629 = scalar_select %p628, %s33, 1
        %s630 = smul.addr %s629, 8
        %s631 = smul.addr %s630, 8
        %s632 = scalar_lea.vmem %s9, %s631
        %p633 = scmp.lt.s32.totalorder %s33, 1
        %s634 = scalar_select %p633, %s33, 1
        %s635 = smul.addr %s634, 8
        %s636 = smul.addr %s635, 8
        %s637 = scalar_lea.vmem %s10, %s636
        %p638 = scmp.lt.s32.totalorder %s33, 1
        %s639 = scalar_select %p638, %s33, 1
        %s640 = smul.addr %s639, 16
        %s641 = smul.addr %s640, 8
        %s642 = scalar_lea.vmem %s11, %s641
        %p643 = scmp.eq.s32.totalorder %s33, 0
        // Predicated region
        $region77: #{language_model_forward.1} parent=75 // pred_check
          %p644 = pneg %p643
        $region78: #{language_model_forward.1} parent=75 // pred_check_branch
          %646 = sbr.rel (%p644) target = $region80
        $region79: #{language_model_forward.1} parent=75 // pred_region
          %v647 = vld [vmem:[%s601] sm:$0xff]
          %vm648 = vcmask 523264
          %649 = vst.msk [vmem:[#allocation2] sm:$0xff] %vm648, %v647
        $region80: #{language_model_forward.1} parent=75 // pred_fallthru
          _
        %v650 = vld [vmem:[#allocation2] sm:$0xff]
        %v651 = vld [vmem:[%s1] sm:$0xff]
        %v652 = vld [vmem:[%s2] sm:$0xff]
        %v653 = vlaneseq
        %v654 = vshrl.u32 %v653, 7
        %v655 = vlaneseq
        %v656 = vand.u32 %v655, 127
        %vm657 = vcmp.ge.s32.totalorder %v654, %v656
        %v658 = vsel %vm657, 0.0, -1e+30
        %v659 = vld [vmem:[%s604] sm:$0x1]
        %v660 = vmul.f32 %v650, %v650
        %vm661 = vcmask 523264
        %v662 = vsel %vm661, %v660, 0.0
        %663 = vadd.xlane.f32.xlu0 %v662
        %v664 = vpop.xlane.xlu0 %663
        %v665 = vrcp.pop 64.0
        %v666 = vmul.f32 %v664, %v665
        %v667 = vadd.f32 %v666, 1e-05
        %v668 = vrsqrt.pop %v667
        %v669 = vmul.f32 %v650, %v668
        %v671 = vlaneseq
        %v672 = vshrl.u32 %v671, 7
        %v673 = vsub.s32 0, %v672
        %v674 = vrot.slane %v659, %v673
        %v676 = vmul.f32 %v669, %v674
        %v677 = vld [vmem:[%s609] sm:$0xff]
        %v678 = vld [vmem:[%s609 + $0x8] sm:$0xff]
        %v679 = vld [vmem:[%s609 + $0x10] sm:$0xff]
        %v680 = vld [vmem:[%s609 + $0x18] sm:$0xff]
        %v681 = vld [vmem:[%s609 + $0x20] sm:$0xff]
        %v682 = vld [vmem:[%s609 + $0x28] sm:$0xff]
        %v683 = vld [vmem:[%s609 + $0x30] sm:$0xff]
        %v684 = vld [vmem:[%s609 + $0x38] sm:$0xff]
        %v686 = vsel %vm661, %v676, 0
        %688 = vmatprep.subr.mxu0 0.0
        %689 = vmatpush1.msra.mxu0 %v677
        %690 = vmatprep.subr.mxu0 0.0
        %691 = vmatpush1.msra.mxu0 %v678
        %692 = vmatprep.subr.mxu0 0.0
        %693 = vmatpush1.msra.mxu0 %v679
        %694 = vmatprep.subr.mxu0 0.0
        %695 = vmatpush1.msra.mxu0 %v680
        %696 = vmatprep.subr.mxu0 0.0
        %697 = vmatpush1.msra.mxu0 %v681
        %698 = vmatprep.subr.mxu0 0.0
        %699 = vmatpush1.msra.mxu0 %v682
        %700 = vmatprep.subr.mxu0 0.0
        %701 = vmatpush1.msra.mxu0 %v683
        %702 = vmatprep.subr.mxu0 0.0
        %703 = vmatpush1.msra.mxu0 %v684
        %704 = vmatprep.subr.mxu0 0.0
        %705 = vmatpush1.msra.mxu0 0.0
        %706 = vmatprep.subr.mxu0 0.0
        %707 = vmatpush1.msra.mxu0 0.0
        %708 = vmatprep.subr.mxu0 0.0
        %709 = vmatpush1.msra.mxu0 0.0
        %710 = vmatprep.subr.mxu0 0.0
        %711 = vmatpush1.msra.mxu0 0.0
        %712 = vmatprep.subr.mxu0 0.0
        %713 = vmatpush1.msra.mxu0 0.0
        %714 = vmatprep.subr.mxu0 0.0
        %715 = vmatpush1.msra.mxu0 0.0
        %716 = vmatprep.subr.mxu0 0.0
        %717 = vmatpush1.msra.mxu0 0.0
        %718 = vmatprep.subr.mxu0 0.0
        %719 = vmatpush1.msra.mxu0 0.0
        %720 = vmatprep.subr.mxu0 0.0
        %721 = vmatpush1.msra.mxu0 0.0
        %722 = vmatprep.subr.mxu0 0.0
        %723 = vmatpush1.msra.mxu0 0.0
        %724 = vmatprep.subr.mxu0 0.0
        %725 = vmatpush1.msra.mxu0 0.0
        %726 = vmatprep.subr.mxu0 0.0
        %727 = vmatpush1.msra.mxu0 0.0
        %728 = vmatprep.subr.mxu0 0.0
        %729 = vmatpush1.msra.mxu0 0.0
        %730 = vmatprep.subr.mxu0 0.0
        %731 = vmatpush1.msra.mxu0 0.0
        %732 = vmatprep.subr.mxu0 0.0
        %733 = vmatpush1.msra.mxu0 0.0
        %734 = vmatprep.subr.mxu0 0.0
        %735 = vmatpush1.msra.mxu0 0.0
        %736 = vmatprep.subr.mxu0 0.0
        %737 = vmatpush1.msra.mxu0 0.0
        %738 = vmatprep.subr.mxu0 0.0
        %739 = vmatpush1.msra.mxu0 0.0
        %740 = vmatprep.subr.mxu0 0.0
        %741 = vmatpush1.msra.mxu0 0.0
        %742 = vmatprep.subr.mxu0 0.0
        %743 = vmatpush1.msra.mxu0 0.0
        %744 = vmatprep.subr.mxu0 0.0
        %745 = vmatpush1.msra.mxu0 0.0
        %746 = vmatprep.subr.mxu0 0.0
        %747 = vmatpush1.msra.mxu0 0.0
        %748 = vmatprep.subr.mxu0 0.0
        %749 = vmatpush1.msra.mxu0 0.0
        %750 = vmatprep.subr.mxu0 0.0
        %751 = vmatpush1.msra.mxu0 0.0
        %752 = vmatprep.mubr.f32.mxu0 0.0
        %753 = vmatmul.mubr.f32.gmra.mrb[0].mxu0 %v686
        %v754 = vpop.f32.mrb[0].mxu0
        %v755 = vadd.f32 0.0, %v754
        %v756 = vpop.f32.mrb[0].mxu0
        %757 = vdwg.mxu0
        %v758 = vld [vmem:[%s614] sm:$0xff]
        %v759 = vld [vmem:[%s614 + $0x8] sm:$0xff]
        %v760 = vld [vmem:[%s614 + $0x10] sm:$0xff]
        %v761 = vld [vmem:[%s614 + $0x18] sm:$0xff]
        %v762 = vld [vmem:[%s614 + $0x20] sm:$0xff]
        %v763 = vld [vmem:[%s614 + $0x28] sm:$0xff]
        %v764 = vld [vmem:[%s614 + $0x30] sm:$0xff]
        %v765 = vld [vmem:[%s614 + $0x38] sm:$0xff]
        %766 = vmatprep.subr.mxu0 0.0
        %767 = vmatpush1.msra.mxu0 %v758
        %768 = vmatprep.subr.mxu0 0.0
        %769 = vmatpush1.msra.mxu0 %v759
        %770 = vmatprep.subr.mxu0 0.0
        %771 = vmatpush1.msra.mxu0 %v760
        %772 = vmatprep.subr.mxu0 0.0
        %773 = vmatpush1.msra.mxu0 %v761
        %774 = vmatprep.subr.mxu0 0.0
        %775 = vmatpush1.msra.mxu0 %v762
        %776 = vmatprep.subr.mxu0 0.0
        %777 = vmatpush1.msra.mxu0 %v763
        %778 = vmatprep.subr.mxu0 0.0
        %779 = vmatpush1.msra.mxu0 %v764
        %780 = vmatprep.subr.mxu0 0.0
        %781 = vmatpush1.msra.mxu0 %v765
        %782 = vmatprep.subr.mxu0 0.0
        %783 = vmatpush1.msra.mxu0 0.0
        %784 = vmatprep.subr.mxu0 0.0
        %785 = vmatpush1.msra.mxu0 0.0
        %786 = vmatprep.subr.mxu0 0.0
        %787 = vmatpush1.msra.mxu0 0.0
        %788 = vmatprep.subr.mxu0 0.0
        %789 = vmatpush1.msra.mxu0 0.0
        %790 = vmatprep.subr.mxu0 0.0
        %791 = vmatpush1.msra.mxu0 0.0
        %792 = vmatprep.subr.mxu0 0.0
        %793 = vmatpush1.msra.mxu0 0.0
        %794 = vmatprep.subr.mxu0 0.0
        %795 = vmatpush1.msra.mxu0 0.0
        %796 = vmatprep.subr.mxu0 0.0
        %797 = vmatpush1.msra.mxu0 0.0
        %798 = vmatprep.subr.mxu0 0.0
        %799 = vmatpush1.msra.mxu0 0.0
        %800 = vmatprep.subr.mxu0 0.0
        %801 = vmatpush1.msra.mxu0 0.0
        %802 = vmatprep.subr.mxu0 0.0
        %803 = vmatpush1.msra.mxu0 0.0
        %804 = vmatprep.subr.mxu0 0.0
        %805 = vmatpush1.msra.mxu0 0.0
        %806 = vmatprep.subr.mxu0 0.0
        %807 = vmatpush1.msra.mxu0 0.0
        %808 = vmatprep.subr.mxu0 0.0
        %809 = vmatpush1.msra.mxu0 0.0
        %810 = vmatprep.subr.mxu0 0.0
        %811 = vmatpush1.msra.mxu0 0.0
        %812 = vmatprep.subr.mxu0 0.0
        %813 = vmatpush1.msra.mxu0 0.0
        %814 = vmatprep.subr.mxu0 0.0
        %815 = vmatpush1.msra.mxu0 0.0
        %816 = vmatprep.subr.mxu0 0.0
        %817 = vmatpush1.msra.mxu0 0.0
        %818 = vmatprep.subr.mxu0 0.0
        %819 = vmatpush1.msra.mxu0 0.0
        %820 = vmatprep.subr.mxu0 0.0
        %821 = vmatpush1.msra.mxu0 0.0
        %822 = vmatprep.subr.mxu0 0.0
        %823 = vmatpush1.msra.mxu0 0.0
        %824 = vmatprep.subr.mxu0 0.0
        %825 = vmatpush1.msra.mxu0 0.0
        %826 = vmatprep.subr.mxu0 0.0
        %827 = vmatpush1.msra.mxu0 0.0
        %828 = vmatprep.subr.mxu0 0.0
        %829 = vmatpush1.msra.mxu0 0.0
        %830 = vmatprep.mubr.f32.mxu0 0.0
        %831 = vmatmul.mubr.f32.gmra.mrb[0].mxu0 %v686
        %v832 = vpop.f32.mrb[0].mxu0
        %v833 = vadd.f32 0.0, %v832
        %v834 = vpop.f32.mrb[0].mxu0
        %835 = vdwg.mxu0
        %v836 = vld [vmem:[%s619] sm:$0xff]
        %v837 = vld [vmem:[%s619 + $0x8] sm:$0xff]
        %v838 = vld [vmem:[%s619 + $0x10] sm:$0xff]
        %v839 = vld [vmem:[%s619 + $0x18] sm:$0xff]
        %v840 = vld [vmem:[%s619 + $0x20] sm:$0xff]
        %v841 = vld [vmem:[%s619 + $0x28] sm:$0xff]
        %v842 = vld [vmem:[%s619 + $0x30] sm:$0xff]
        %v843 = vld [vmem:[%s619 + $0x38] sm:$0xff]
        %844 = vmatprep.subr.mxu0 0.0
        %845 = vmatpush1.msra.mxu0 %v836
        %846 = vmatprep.subr.mxu0 0.0
        %847 = vmatpush1.msra.mxu0 %v837
        %848 = vmatprep.subr.mxu0 0.0
        %849 = vmatpush1.msra.mxu0 %v838
        %850 = vmatprep.subr.mxu0 0.0
        %851 = vmatpush1.msra.mxu0 %v839
        %852 = vmatprep.subr.mxu0 0.0
        %853 = vmatpush1.msra.mxu0 %v840
        %854 = vmatprep.subr.mxu0 0.0
        %855 = vmatpush1.msra.mxu0 %v841
        %856 = vmatprep.subr.mxu0 0.0
        %857 = vmatpush1.msra.mxu0 %v842
        %858 = vmatprep.subr.mxu0 0.0
        %859 = vmatpush1.msra.mxu0 %v843
        %860 = vmatprep.subr.mxu0 0.0
        %861 = vmatpush1.msra.mxu0 0.0
        %862 = vmatprep.subr.mxu0 0.0
        %863 = vmatpush1.msra.mxu0 0.0
        %864 = vmatprep.subr.mxu0 0.0
        %865 = vmatpush1.msra.mxu0 0.0
        %866 = vmatprep.subr.mxu0 0.0
        %867 = vmatpush1.msra.mxu0 0.0
        %868 = vmatprep.subr.mxu0 0.0
        %869 = vmatpush1.msra.mxu0 0.0
        %870 = vmatprep.subr.mxu0 0.0
        %871 = vmatpush1.msra.mxu0 0.0
        %872 = vmatprep.subr.mxu0 0.0
        %873 = vmatpush1.msra.mxu0 0.0
        %874 = vmatprep.subr.mxu0 0.0
        %875 = vmatpush1.msra.mxu0 0.0
        %876 = vmatprep.subr.mxu0 0.0
        %877 = vmatpush1.msra.mxu0 0.0
        %878 = vmatprep.subr.mxu0 0.0
        %879 = vmatpush1.msra.mxu0 0.0
        %880 = vmatprep.subr.mxu0 0.0
        %881 = vmatpush1.msra.mxu0 0.0
        %882 = vmatprep.subr.mxu0 0.0
        %883 = vmatpush1.msra.mxu0 0.0
        %884 = vmatprep.subr.mxu0 0.0
        %885 = vmatpush1.msra.mxu0 0.0
        %886 = vmatprep.subr.mxu0 0.0
        %887 = vmatpush1.msra.mxu0 0.0
        %888 = vmatprep.subr.mxu0 0.0
        %889 = vmatpush1.msra.mxu0 0.0
        %890 = vmatprep.subr.mxu0 0.0
        %891 = vmatpush1.msra.mxu0 0.0
        %892 = vmatprep.subr.mxu0 0.0
        %893 = vmatpush1.msra.mxu0 0.0
        %894 = vmatprep.subr.mxu0 0.0
        %895 = vmatpush1.msra.mxu0 0.0
        %896 = vmatprep.subr.mxu0 0.0
        %897 = vmatpush1.msra.mxu0 0.0
        %898 = vmatprep.subr.mxu0 0.0
        %899 = vmatpush1.msra.mxu0 0.0
        %900 = vmatprep.subr.mxu0 0.0
        %901 = vmatpush1.msra.mxu0 0.0
        %902 = vmatprep.subr.mxu0 0.0
        %903 = vmatpush1.msra.mxu0 0.0
        %904 = vmatprep.subr.mxu0 0.0
        %905 = vmatpush1.msra.mxu0 0.0
        %906 = vmatprep.subr.mxu0 0.0
        %907 = vmatpush1.msra.mxu0 0.0
        %908 = vmatprep.mubr.f32.mxu0 0.0
        %909 = vmatmul.mubr.f32.gmra.mrb[0].mxu0 %v686
        %v910 = vpop.f32.mrb[0].mxu0
        %v911 = vadd.f32 0.0, %v910
        %v912 = vpop.f32.mrb[0].mxu0
        %913 = vdwg.mxu0
        %v914 = vmul.f32 %v833, %v651
        %v915 = vsub.f32 0.0, %v833
        %917 = vrot.lane.b32.xlu0 %v915, 120
        %v918 = vpop.permute.xlu0 %917
        %921 = vrot.lane.b32.xlu0 %v833, 8
        %v922 = vpop.permute.xlu0 %921
        %vm924 = vcmask 64512
        %v925 = vsel %vm924, %v918, %v922
        %v926 = vmul.f32 %v925, %v652
        %v927 = vadd.f32 %v914, %v926
        %929 = vrot.lane.b32.xlu0 %v651, 16
        %v930 = vpop.permute.xlu0 %929
        %v932 = vmul.f32 %v833, %v930
        %933 = vrot.lane.b32.xlu0 %v915, 104
        %v934 = vpop.permute.xlu0 %933
        %936 = vrot.lane.b32.xlu0 %v833, 120
        %v937 = vpop.permute.xlu0 %936
        %v939 = vsel %vm924, %v934, %v937
        %v940 = vmul.f32 %v939, %v652
        %942 = vrot.lane.b32.xlu0 %v940, 16
        %v943 = vpop.permute.xlu0 %942
        %v945 = vadd.f32 %v932, %v943
        %v946 = vmul.f32 %v755, %v651
        %v947 = vsub.f32 0.0, %v755
        %949 = vrot.lane.b32.xlu0 %v947, 120
        %v950 = vpop.permute.xlu0 %949
        %953 = vrot.lane.b32.xlu0 %v755, 8
        %v954 = vpop.permute.xlu0 %953
        %v956 = vsel %vm924, %v950, %v954
        %v957 = vmul.f32 %v956, %v652
        %v958 = vadd.f32 %v946, %v957
        %vm959 = vcmask 130048
        %v961 = vsel %vm959, %v958, 0
        %v964 = vsel %vm959, %v927, 0
        %966 = vmatprep.subr.mxu0 0.0
        %967 = vmatpush1.xpose.msra.mxu0 %v964
        %968 = vmatprep.subr.mxu0 0.0
        %969 = vmatpush1.xpose.msra.mxu0 0.0
        %970 = vmatprep.subr.mxu0 0.0
        %971 = vmatpush1.xpose.msra.mxu0 0.0
        %972 = vmatprep.subr.mxu0 0.0
        %973 = vmatpush1.xpose.msra.mxu0 0.0
        %974 = vmatprep.subr.mxu0 0.0
        %975 = vmatpush1.xpose.msra.mxu0 0.0
        %976 = vmatprep.subr.mxu0 0.0
        %977 = vmatpush1.xpose.msra.mxu0 0.0
        %978 = vmatprep.subr.mxu0 0.0
        %979 = vmatpush1.xpose.msra.mxu0 0.0
        %980 = vmatprep.subr.mxu0 0.0
        %981 = vmatpush1.xpose.msra.mxu0 0.0
        %982 = vmatprep.subr.mxu0 0.0
        %983 = vmatpush1.xpose.msra.mxu0 0.0
        %984 = vmatprep.subr.mxu0 0.0
        %985 = vmatpush1.xpose.msra.mxu0 0.0
        %986 = vmatprep.subr.mxu0 0.0
        %987 = vmatpush1.xpose.msra.mxu0 0.0
        %988 = vmatprep.subr.mxu0 0.0
        %989 = vmatpush1.xpose.msra.mxu0 0.0
        %990 = vmatprep.subr.mxu0 0.0
        %991 = vmatpush1.xpose.msra.mxu0 0.0
        %992 = vmatprep.subr.mxu0 0.0
        %993 = vmatpush1.xpose.msra.mxu0 0.0
        %994 = vmatprep.subr.mxu0 0.0
        %995 = vmatpush1.xpose.msra.mxu0 0.0
        %996 = vmatprep.subr.mxu0 0.0
        %997 = vmatpush1.xpose.msra.mxu0 0.0
        %998 = vmatprep.subr.mxu0 0.0
        %999 = vmatpush1.xpose.msra.mxu0 0.0
        %1000 = vmatprep.subr.mxu0 0.0
        %1001 = vmatpush1.xpose.msra.mxu0 0.0
        %1002 = vmatprep.subr.mxu0 0.0
        %1003 = vmatpush1.xpose.msra.mxu0 0.0
        %1004 = vmatprep.subr.mxu0 0.0
        %1005 = vmatpush1.xpose.msra.mxu0 0.0
        %1006 = vmatprep.subr.mxu0 0.0
        %1007 = vmatpush1.xpose.msra.mxu0 0.0
        %1008 = vmatprep.subr.mxu0 0.0
        %1009 = vmatpush1.xpose.msra.mxu0 0.0
        %1010 = vmatprep.subr.mxu0 0.0
        %1011 = vmatpush1.xpose.msra.mxu0 0.0
        %1012 = vmatprep.subr.mxu0 0.0
        %1013 = vmatpush1.xpose.msra.mxu0 0.0
        %1014 = vmatprep.subr.mxu0 0.0
        %1015 = vmatpush1.xpose.msra.mxu0 0.0
        %1016 = vmatprep.subr.mxu0 0.0
        %1017 = vmatpush1.xpose.msra.mxu0 0.0
        %1018 = vmatprep.subr.mxu0 0.0
        %1019 = vmatpush1.xpose.msra.mxu0 0.0
        %1020 = vmatprep.subr.mxu0 0.0
        %1021 = vmatpush1.xpose.msra.mxu0 0.0
        %1022 = vmatprep.subr.mxu0 0.0
        %1023 = vmatpush1.xpose.msra.mxu0 0.0
        %1024 = vmatprep.subr.mxu0 0.0
        %1025 = vmatpush1.xpose.msra.mxu0 0.0
        %1026 = vmatprep.subr.mxu0 0.0
        %1027 = vmatpush1.xpose.msra.mxu0 0.0
        %1028 = vmatprep.subr.mxu0 0.0
        %1029 = vmatpush1.xpose.msra.mxu0 0.0
        %1030 = vmatprep.mubr.f32.mxu0 0.0
        %1031 = vmatmul.mubr.f32.gmra.mrb[0].mxu0 %v961
        %v1032 = vpop.f32.mrb[0].mxu0
        %v1033 = vadd.f32 0.0, %v1032
        %v1034 = vpop.f32.mrb[0].mxu0
        %1035 = vdwg.mxu0
        %v1036 = vmul.f32 %v1033, 0.25
        %v1037 = vadd.f32 %v1036, %v658
        %v1038 = vsel %vm924, %v1037, -inf
        %1039 = vmax.xlane.f32.xlu0 %v1038
        %v1040 = vpop.xlane.xlu0 %1039
        %v1041 = vsub.f32 %v1037, %v1040
        %v1042 = vmul.f32 %v1041, 1.442695
        %v1043 = vpow.pop %v1042
        %v1044 = vsel %vm924, %v1043, 0.0
        %1045 = vadd.xlane.f32.xlu0 %v1044
        %v1046 = vpop.xlane.xlu0 %1045
        %v1047 = vrcp.pop %v1046
        %v1048 = vmul.f32 %v1043, %v1047
        %v1050 = vsel %vm924, %v1048, 0
        %1052 = vmatprep.subr.mxu0 0.0
        %1053 = vmatpush1.msra.mxu0 %v911
        %1054 = vmatprep.subr.mxu0 0.0
        %1055 = vmatpush1.msra.mxu0 0.0
        %1056 = vmatprep.subr.mxu0 0.0
        %1057 = vmatpush1.msra.mxu0 0.0
        %1058 = vmatprep.subr.mxu0 0.0
        %1059 = vmatpush1.msra.mxu0 0.0
        %1060 = vmatprep.subr.mxu0 0.0
        %1061 = vmatpush1.msra.mxu0 0.0
        %1062 = vmatprep.subr.mxu0 0.0
        %1063 = vmatpush1.msra.mxu0 0.0
        %1064 = vmatprep.subr.mxu0 0.0
        %1065 = vmatpush1.msra.mxu0 0.0
        %1066 = vmatprep.subr.mxu0 0.0
        %1067 = vmatpush1.msra.mxu0 0.0
        %1068 = vmatprep.subr.mxu0 0.0
        %1069 = vmatpush1.msra.mxu0 0.0
        %1070 = vmatprep.subr.mxu0 0.0
        %1071 = vmatpush1.msra.mxu0 0.0
        %1072 = vmatprep.subr.mxu0 0.0
        %1073 = vmatpush1.msra.mxu0 0.0
        %1074 = vmatprep.subr.mxu0 0.0
        %1075 = vmatpush1.msra.mxu0 0.0
        %1076 = vmatprep.subr.mxu0 0.0
        %1077 = vmatpush1.msra.mxu0 0.0
        %1078 = vmatprep.subr.mxu0 0.0
        %1079 = vmatpush1.msra.mxu0 0.0
        %1080 = vmatprep.subr.mxu0 0.0
        %1081 = vmatpush1.msra.mxu0 0.0
        %1082 = vmatprep.subr.mxu0 0.0
        %1083 = vmatpush1.msra.mxu0 0.0
        %1084 = vmatprep.subr.mxu0 0.0
        %1085 = vmatpush1.msra.mxu0 0.0
        %1086 = vmatprep.subr.mxu0 0.0
        %1087 = vmatpush1.msra.mxu0 0.0
        %1088 = vmatprep.subr.mxu0 0.0
        %1089 = vmatpush1.msra.mxu0 0.0
        %1090 = vmatprep.subr.mxu0 0.0
        %1091 = vmatpush1.msra.mxu0 0.0
        %1092 = vmatprep.subr.mxu0 0.0
        %1093 = vmatpush1.msra.mxu0 0.0
        %1094 = vmatprep.subr.mxu0 0.0
        %1095 = vmatpush1.msra.mxu0 0.0
        %1096 = vmatprep.subr.mxu0 0.0
        %1097 = vmatpush1.msra.mxu0 0.0
        %1098 = vmatprep.subr.mxu0 0.0
        %1099 = vmatpush1.msra.mxu0 0.0
        %1100 = vmatprep.subr.mxu0 0.0
        %1101 = vmatpush1.msra.mxu0 0.0
        %1102 = vmatprep.subr.mxu0 0.0
        %1103 = vmatpush1.msra.mxu0 0.0
        %1104 = vmatprep.subr.mxu0 0.0
        %1105 = vmatpush1.msra.mxu0 0.0
        %1106 = vmatprep.subr.mxu0 0.0
        %1107 = vmatpush1.msra.mxu0 0.0
        %1108 = vmatprep.subr.mxu0 0.0
        %1109 = vmatpush1.msra.mxu0 0.0
        %1110 = vmatprep.subr.mxu0 0.0
        %1111 = vmatpush1.msra.mxu0 0.0
        %1112 = vmatprep.subr.mxu0 0.0
        %1113 = vmatpush1.msra.mxu0 0.0
        %1114 = vmatprep.subr.mxu0 0.0
        %1115 = vmatpush1.msra.mxu0 0.0
        %1116 = vmatprep.mubr.f32.mxu0 0.0
        %1117 = vmatmul.mubr.f32.gmra.mrb[0].mxu0 %v1050
        %v1118 = vpop.f32.mrb[0].mxu0
        %v1119 = vadd.f32 0.0, %v1118
        %v1120 = vpop.f32.mrb[0].mxu0
        %1121 = vdwg.mxu0
        %v1122 = vmul.f32 %v755, %v930
        %1123 = vrot.lane.b32.xlu0 %v947, 104
        %v1124 = vpop.permute.xlu0 %1123
        %1126 = vrot.lane.b32.xlu0 %v755, 120
        %v1127 = vpop.permute.xlu0 %1126
        %v1129 = vsel %vm924, %v1124, %v1127
        %v1130 = vmul.f32 %v1129, %v652
        %1132 = vrot.lane.b32.xlu0 %v1130, 16
        %v1133 = vpop.permute.xlu0 %1132
        %v1135 = vadd.f32 %v1122, %v1133
        %1137 = vrot.lane.b32.xlu0 %v1135, 112
        %v1138 = vpop.permute.xlu0 %1137
        %v1139 = vsel %vm959, %v1138, 0
        %1141 = vmatprep.subr.mxu0 0.0
        %1142 = vmatpush1.xpose.msra.mxu0 %v964
        %1143 = vmatprep.subr.mxu0 0.0
        %1144 = vmatpush1.xpose.msra.mxu0 0.0
        %1145 = vmatprep.subr.mxu0 0.0
        %1146 = vmatpush1.xpose.msra.mxu0 0.0
        %1147 = vmatprep.subr.mxu0 0.0
        %1148 = vmatpush1.xpose.msra.mxu0 0.0
        %1149 = vmatprep.subr.mxu0 0.0
        %1150 = vmatpush1.xpose.msra.mxu0 0.0
        %1151 = vmatprep.subr.mxu0 0.0
        %1152 = vmatpush1.xpose.msra.mxu0 0.0
        %1153 = vmatprep.subr.mxu0 0.0
        %1154 = vmatpush1.xpose.msra.mxu0 0.0
        %1155 = vmatprep.subr.mxu0 0.0
        %1156 = vmatpush1.xpose.msra.mxu0 0.0
        %1157 = vmatprep.subr.mxu0 0.0
        %1158 = vmatpush1.xpose.msra.mxu0 0.0
        %1159 = vmatprep.subr.mxu0 0.0
        %1160 = vmatpush1.xpose.msra.mxu0 0.0
        %1161 = vmatprep.subr.mxu0 0.0
        %1162 = vmatpush1.xpose.msra.mxu0 0.0
        %1163 = vmatprep.subr.mxu0 0.0
        %1164 = vmatpush1.xpose.msra.mxu0 0.0
        %1165 = vmatprep.subr.mxu0 0.0
        %1166 = vmatpush1.xpose.msra.mxu0 0.0
        %1167 = vmatprep.subr.mxu0 0.0
        %1168 = vmatpush1.xpose.msra.mxu0 0.0
        %1169 = vmatprep.subr.mxu0 0.0
        %1170 = vmatpush1.xpose.msra.mxu0 0.0
        %1171 = vmatprep.subr.mxu0 0.0
        %1172 = vmatpush1.xpose.msra.mxu0 0.0
        %1173 = vmatprep.subr.mxu0 0.0
        %1174 = vmatpush1.xpose.msra.mxu0 0.0
        %1175 = vmatprep.subr.mxu0 0.0
        %1176 = vmatpush1.xpose.msra.mxu0 0.0
        %1177 = vmatprep.subr.mxu0 0.0
        %1178 = vmatpush1.xpose.msra.mxu0 0.0
        %1179 = vmatprep.subr.mxu0 0.0
        %1180 = vmatpush1.xpose.msra.mxu0 0.0
        %1181 = vmatprep.subr.mxu0 0.0
        %1182 = vmatpush1.xpose.msra.mxu0 0.0
        %1183 = vmatprep.subr.mxu0 0.0
        %1184 = vmatpush1.xpose.msra.mxu0 0.0
        %1185 = vmatprep.subr.mxu0 0.0
        %1186 = vmatpush1.xpose.msra.mxu0 0.0
        %1187 = vmatprep.subr.mxu0 0.0
        %1188 = vmatpush1.xpose.msra.mxu0 0.0
        %1189 = vmatprep.subr.mxu0 0.0
        %1190 = vmatpush1.xpose.msra.mxu0 0.0
        %1191 = vmatprep.subr.mxu0 0.0
        %1192 = vmatpush1.xpose.msra.mxu0 0.0
        %1193 = vmatprep.subr.mxu0 0.0
        %1194 = vmatpush1.xpose.msra.mxu0 0.0
        %1195 = vmatprep.subr.mxu0 0.0
        %1196 = vmatpush1.xpose.msra.mxu0 0.0
        %1197 = vmatprep.subr.mxu0 0.0
        %1198 = vmatpush1.xpose.msra.mxu0 0.0
        %1199 = vmatprep.subr.mxu0 0.0
        %1200 = vmatpush1.xpose.msra.mxu0 0.0
        %1201 = vmatprep.subr.mxu0 0.0
        %1202 = vmatpush1.xpose.msra.mxu0 0.0
        %1203 = vmatprep.subr.mxu0 0.0
        %1204 = vmatpush1.xpose.msra.mxu0 0.0
        %1205 = vmatprep.mubr.f32.mxu0 0.0
        %1206 = vmatmul.mubr.f32.gmra.mrb[0].mxu0 %v1139
        %v1207 = vpop.f32.mrb[0].mxu0
        %v1208 = vadd.f32 0.0, %v1207
        %v1209 = vpop.f32.mrb[0].mxu0
        %1210 = vdwg.mxu0
        %v1211 = vmul.f32 %v1208, 0.25
        %v1212 = vadd.f32 %v1211, %v658
        %v1213 = vsel %vm924, %v1212, -inf
        %1214 = vmax.xlane.f32.xlu0 %v1213
        %v1215 = vpop.xlane.xlu0 %1214
        %v1216 = vsub.f32 %v1212, %v1215
        %v1217 = vmul.f32 %v1216, 1.442695
        %v1218 = vpow.pop %v1217
        %v1219 = vsel %vm924, %v1218, 0.0
        %1220 = vadd.xlane.f32.xlu0 %v1219
        %v1221 = vpop.xlane.xlu0 %1220
        %v1222 = vrcp.pop %v1221
        %v1223 = vmul.f32 %v1218, %v1222
        %v1225 = vsel %vm924, %v1223, 0
        %1227 = vmatprep.subr.mxu0 0.0
        %1228 = vmatpush1.msra.mxu0 %v911
        %1229 = vmatprep.subr.mxu0 0.0
        %1230 = vmatpush1.msra.mxu0 0.0
        %1231 = vmatprep.subr.mxu0 0.0
        %1232 = vmatpush1.msra.mxu0 0.0
        %1233 = vmatprep.subr.mxu0 0.0
        %1234 = vmatpush1.msra.mxu0 0.0
        %1235 = vmatprep.subr.mxu0 0.0
        %1236 = vmatpush1.msra.mxu0 0.0
        %1237 = vmatprep.subr.mxu0 0.0
        %1238 = vmatpush1.msra.mxu0 0.0
        %1239 = vmatprep.subr.mxu0 0.0
        %1240 = vmatpush1.msra.mxu0 0.0
        %1241 = vmatprep.subr.mxu0 0.0
        %1242 = vmatpush1.msra.mxu0 0.0
        %1243 = vmatprep.subr.mxu0 0.0
        %1244 = vmatpush1.msra.mxu0 0.0
        %1245 = vmatprep.subr.mxu0 0.0
        %1246 = vmatpush1.msra.mxu0 0.0
        %1247 = vmatprep.subr.mxu0 0.0
        %1248 = vmatpush1.msra.mxu0 0.0
        %1249 = vmatprep.subr.mxu0 0.0
        %1250 = vmatpush1.msra.mxu0 0.0
        %1251 = vmatprep.subr.mxu0 0.0
        %1252 = vmatpush1.msra.mxu0 0.0
        %1253 = vmatprep.subr.mxu0 0.0
        %1254 = vmatpush1.msra.mxu0 0.0
        %1255 = vmatprep.subr.mxu0 0.0
        %1256 = vmatpush1.msra.mxu0 0.0
        %1257 = vmatprep.subr.mxu0 0.0
        %1258 = vmatpush1.msra.mxu0 0.0
        %1259 = vmatprep.subr.mxu0 0.0
        %1260 = vmatpush1.msra.mxu0 0.0
        %1261 = vmatprep.subr.mxu0 0.0
        %1262 = vmatpush1.msra.mxu0 0.0
        %1263 = vmatprep.subr.mxu0 0.0
        %1264 = vmatpush1.msra.mxu0 0.0
        %1265 = vmatprep.subr.mxu0 0.0
        %1266 = vmatpush1.msra.mxu0 0.0
        %1267 = vmatprep.subr.mxu0 0.0
        %1268 = vmatpush1.msra.mxu0 0.0
        %1269 = vmatprep.subr.mxu0 0.0
        %1270 = vmatpush1.msra.mxu0 0.0
        %1271 = vmatprep.subr.mxu0 0.0
        %1272 = vmatpush1.msra.mxu0 0.0
        %1273 = vmatprep.subr.mxu0 0.0
        %1274 = vmatpush1.msra.mxu0 0.0
        %1275 = vmatprep.subr.mxu0 0.0
        %1276 = vmatpush1.msra.mxu0 0.0
        %1277 = vmatprep.subr.mxu0 0.0
        %1278 = vmatpush1.msra.mxu0 0.0
        %1279 = vmatprep.subr.mxu0 0.0
        %1280 = vmatpush1.msra.mxu0 0.0
        %1281 = vmatprep.subr.mxu0 0.0
        %1282 = vmatpush1.msra.mxu0 0.0
        %1283 = vmatprep.subr.mxu0 0.0
        %1284 = vmatpush1.msra.mxu0 0.0
        %1285 = vmatprep.subr.mxu0 0.0
        %1286 = vmatpush1.msra.mxu0 0.0
        %1287 = vmatprep.subr.mxu0 0.0
        %1288 = vmatpush1.msra.mxu0 0.0
        %1289 = vmatprep.subr.mxu0 0.0
        %1290 = vmatpush1.msra.mxu0 0.0
        %1291 = vmatprep.mubr.f32.mxu0 0.0
        %1292 = vmatmul.mubr.f32.gmra.mrb[0].mxu0 %v1225
        %v1293 = vpop.f32.mrb[0].mxu0
        %v1294 = vadd.f32 0.0, %v1293
        %v1295 = vpop.f32.mrb[0].mxu0
        %1296 = vdwg.mxu0
        %1297 = vrot.lane.b32.xlu0 %v651, 32
        %v1298 = vpop.permute.xlu0 %1297
        %v1300 = vmul.f32 %v755, %v1298
        %1301 = vrot.lane.b32.xlu0 %v947, 88
        %v1302 = vpop.permute.xlu0 %1301
        %1304 = vrot.lane.b32.xlu0 %v755, 104
        %v1305 = vpop.permute.xlu0 %1304
        %v1307 = vsel %vm924, %v1302, %v1305
        %v1308 = vmul.f32 %v1307, %v652
        %1310 = vrot.lane.b32.xlu0 %v1308, 32
        %v1311 = vpop.permute.xlu0 %1310
        %v1313 = vadd.f32 %v1300, %v1311
        %1315 = vrot.lane.b32.xlu0 %v1313, 96
        %v1316 = vpop.permute.xlu0 %1315
        %1318 = vrot.lane.b32.xlu0 %v945, 112
        %v1319 = vpop.permute.xlu0 %1318
        %v1320 = vsel %vm959, %v1316, 0
        %v1322 = vsel %vm959, %v1319, 0
        %1324 = vmatprep.subr.mxu0 0.0
        %1325 = vmatpush1.xpose.msra.mxu0 %v1322
        %1326 = vmatprep.subr.mxu0 0.0
        %1327 = vmatpush1.xpose.msra.mxu0 0.0
        %1328 = vmatprep.subr.mxu0 0.0
        %1329 = vmatpush1.xpose.msra.mxu0 0.0
        %1330 = vmatprep.subr.mxu0 0.0
        %1331 = vmatpush1.xpose.msra.mxu0 0.0
        %1332 = vmatprep.subr.mxu0 0.0
        %1333 = vmatpush1.xpose.msra.mxu0 0.0
        %1334 = vmatprep.subr.mxu0 0.0
        %1335 = vmatpush1.xpose.msra.mxu0 0.0
        %1336 = vmatprep.subr.mxu0 0.0
        %1337 = vmatpush1.xpose.msra.mxu0 0.0
        %1338 = vmatprep.subr.mxu0 0.0
        %1339 = vmatpush1.xpose.msra.mxu0 0.0
        %1340 = vmatprep.subr.mxu0 0.0
        %1341 = vmatpush1.xpose.msra.mxu0 0.0
        %1342 = vmatprep.subr.mxu0 0.0
        %1343 = vmatpush1.xpose.msra.mxu0 0.0
        %1344 = vmatprep.subr.mxu0 0.0
        %1345 = vmatpush1.xpose.msra.mxu0 0.0
        %1346 = vmatprep.subr.mxu0 0.0
        %1347 = vmatpush1.xpose.msra.mxu0 0.0
        %1348 = vmatprep.subr.mxu0 0.0
        %1349 = vmatpush1.xpose.msra.mxu0 0.0
        %1350 = vmatprep.subr.mxu0 0.0
        %1351 = vmatpush1.xpose.msra.mxu0 0.0
        %1352 = vmatprep.subr.mxu0 0.0
        %1353 = vmatpush1.xpose.msra.mxu0 0.0
        %1354 = vmatprep.subr.mxu0 0.0
        %1355 = vmatpush1.xpose.msra.mxu0 0.0
        %1356 = vmatprep.subr.mxu0 0.0
        %1357 = vmatpush1.xpose.msra.mxu0 0.0
        %1358 = vmatprep.subr.mxu0 0.0
        %1359 = vmatpush1.xpose.msra.mxu0 0.0
        %1360 = vmatprep.subr.mxu0 0.0
        %1361 = vmatpush1.xpose.msra.mxu0 0.0
        %1362 = vmatprep.subr.mxu0 0.0
        %1363 = vmatpush1.xpose.msra.mxu0 0.0
        %1364 = vmatprep.subr.mxu0 0.0
        %1365 = vmatpush1.xpose.msra.mxu0 0.0
        %1366 = vmatprep.subr.mxu0 0.0
        %1367 = vmatpush1.xpose.msra.mxu0 0.0
        %1368 = vmatprep.subr.mxu0 0.0
        %1369 = vmatpush1.xpose.msra.mxu0 0.0
        %1370 = vmatprep.subr.mxu0 0.0
        %1371 = vmatpush1.xpose.msra.mxu0 0.0
        %1372 = vmatprep.subr.mxu0 0.0
        %1373 = vmatpush1.xpose.msra.mxu0 0.0
        %1374 = vmatprep.subr.mxu0 0.0
        %1375 = vmatpush1.xpose.msra.mxu0 0.0
        %1376 = vmatprep.subr.mxu0 0.0
        %1377 = vmatpush1.xpose.msra.mxu0 0.0
        %1378 = vmatprep.subr.mxu0 0.0
        %1379 = vmatpush1.xpose.msra.mxu0 0.0
        %1380 = vmatprep.subr.mxu0 0.0
        %1381 = vmatpush1.xpose.msra.mxu0 0.0
        %1382 = vmatprep.subr.mxu0 0.0
        %1383 = vmatpush1.xpose.msra.mxu0 0.0
        %1384 = vmatprep.subr.mxu0 0.0
        %1385 = vmatpush1.xpose.msra.mxu0 0.0
        %1386 = vmatprep.subr.mxu0 0.0
        %1387 = vmatpush1.xpose.msra.mxu0 0.0
        %1388 = vmatprep.mubr.f32.mxu0 0.0
        %1389 = vmatmul.mubr.f32.gmra.mrb[0].mxu0 %v1320
        %v1390 = vpop.f32.mrb[0].mxu0
        %v1391 = vadd.f32 0.0, %v1390
        %v1392 = vpop.f32.mrb[0].mxu0
        %1393 = vdwg.mxu0
        %v1394 = vmul.f32 %v1391, 0.25
        %v1395 = vadd.f32 %v1394, %v658
        %v1396 = vsel %vm924, %v1395, -inf
        %1397 = vmax.xlane.f32.xlu0 %v1396
        %v1398 = vpop.xlane.xlu0 %1397
        %v1399 = vsub.f32 %v1395, %v1398
        %v1400 = vmul.f32 %v1399, 1.442695
        %v1401 = vpow.pop %v1400
        %v1402 = vsel %vm924, %v1401, 0.0
        %1403 = vadd.xlane.f32.xlu0 %v1402
        %v1404 = vpop.xlane.xlu0 %1403
        %v1405 = vrcp.pop %v1404
        %v1406 = vmul.f32 %v1401, %v1405
        %1408 = vrot.lane.b32.xlu0 %v911, 112
        %v1409 = vpop.permute.xlu0 %1408
        %v1412 = vsel %vm924, %v1406, 0
        %1414 = vmatprep.subr.mxu0 0.0
        %1415 = vmatpush1.msra.mxu0 %v1409
        %1416 = vmatprep.subr.mxu0 0.0
        %1417 = vmatpush1.msra.mxu0 0.0
        %1418 = vmatprep.subr.mxu0 0.0
        %1419 = vmatpush1.msra.mxu0 0.0
        %1420 = vmatprep.subr.mxu0 0.0
        %1421 = vmatpush1.msra.mxu0 0.0
        %1422 = vmatprep.subr.mxu0 0.0
        %1423 = vmatpush1.msra.mxu0 0.0
        %1424 = vmatprep.subr.mxu0 0.0
        %1425 = vmatpush1.msra.mxu0 0.0
        %1426 = vmatprep.subr.mxu0 0.0
        %1427 = vmatpush1.msra.mxu0 0.0
        %1428 = vmatprep.subr.mxu0 0.0
        %1429 = vmatpush1.msra.mxu0 0.0
        %1430 = vmatprep.subr.mxu0 0.0
        %1431 = vmatpush1.msra.mxu0 0.0
        %1432 = vmatprep.subr.mxu0 0.0
        %1433 = vmatpush1.msra.mxu0 0.0
        %1434 = vmatprep.subr.mxu0 0.0
        %1435 = vmatpush1.msra.mxu0 0.0
        %1436 = vmatprep.subr.mxu0 0.0
        %1437 = vmatpush1.msra.mxu0 0.0
        %1438 = vmatprep.subr.mxu0 0.0
        %1439 = vmatpush1.msra.mxu0 0.0
        %1440 = vmatprep.subr.mxu0 0.0
        %1441 = vmatpush1.msra.mxu0 0.0
        %1442 = vmatprep.subr.mxu0 0.0
        %1443 = vmatpush1.msra.mxu0 0.0
        %1444 = vmatprep.subr.mxu0 0.0
        %1445 = vmatpush1.msra.mxu0 0.0
        %1446 = vmatprep.subr.mxu0 0.0
        %1447 = vmatpush1.msra.mxu0 0.0
        %1448 = vmatprep.subr.mxu0 0.0
        %1449 = vmatpush1.msra.mxu0 0.0
        %1450 = vmatprep.subr.mxu0 0.0
        %1451 = vmatpush1.msra.mxu0 0.0
        %1452 = vmatprep.subr.mxu0 0.0
        %1453 = vmatpush1.msra.mxu0 0.0
        %1454 = vmatprep.subr.mxu0 0.0
        %1455 = vmatpush1.msra.mxu0 0.0
        %1456 = vmatprep.subr.mxu0 0.0
        %1457 = vmatpush1.msra.mxu0 0.0
        %1458 = vmatprep.subr.mxu0 0.0
        %1459 = vmatpush1.msra.mxu0 0.0
        %1460 = vmatprep.subr.mxu0 0.0
        %1461 = vmatpush1.msra.mxu0 0.0
        %1462 = vmatprep.subr.mxu0 0.0
        %1463 = vmatpush1.msra.mxu0 0.0
        %1464 = vmatprep.subr.mxu0 0.0
        %1465 = vmatpush1.msra.mxu0 0.0
        %1466 = vmatprep.subr.mxu0 0.0
        %1467 = vmatpush1.msra.mxu0 0.0
        %1468 = vmatprep.subr.mxu0 0.0
        %1469 = vmatpush1.msra.mxu0 0.0
        %1470 = vmatprep.subr.mxu0 0.0
        %1471 = vmatpush1.msra.mxu0 0.0
        %1472 = vmatprep.subr.mxu0 0.0
        %1473 = vmatpush1.msra.mxu0 0.0
        %1474 = vmatprep.subr.mxu0 0.0
        %1475 = vmatpush1.msra.mxu0 0.0
        %1476 = vmatprep.subr.mxu0 0.0
        %1477 = vmatpush1.msra.mxu0 0.0
        %1478 = vmatprep.mubr.f32.mxu0 0.0
        %1479 = vmatmul.mubr.f32.gmra.mrb[0].mxu0 %v1412
        %v1480 = vpop.f32.mrb[0].mxu0
        %v1481 = vadd.f32 0.0, %v1480
        %v1482 = vpop.f32.mrb[0].mxu0
        %1483 = vdwg.mxu0
        %1484 = vrot.lane.b32.xlu0 %v651, 48
        %v1485 = vpop.permute.xlu0 %1484
        %v1487 = vmul.f32 %v755, %v1485
        %1488 = vrot.lane.b32.xlu0 %v947, 72
        %v1489 = vpop.permute.xlu0 %1488
        %1491 = vrot.lane.b32.xlu0 %v755, 88
        %v1492 = vpop.permute.xlu0 %1491
        %v1494 = vsel %vm924, %v1489, %v1492
        %v1495 = vmul.f32 %v1494, %v652
        %1497 = vrot.lane.b32.xlu0 %v1495, 48
        %v1498 = vpop.permute.xlu0 %1497
        %v1500 = vadd.f32 %v1487, %v1498
        %1502 = vrot.lane.b32.xlu0 %v1500, 80
        %v1503 = vpop.permute.xlu0 %1502
        %v1504 = vsel %vm959, %v1503, 0
        %1506 = vmatprep.subr.mxu0 0.0
        %1507 = vmatpush1.xpose.msra.mxu0 %v1322
        %1508 = vmatprep.subr.mxu0 0.0
        %1509 = vmatpush1.xpose.msra.mxu0 0.0
        %1510 = vmatprep.subr.mxu0 0.0
        %1511 = vmatpush1.xpose.msra.mxu0 0.0
        %1512 = vmatprep.subr.mxu0 0.0
        %1513 = vmatpush1.xpose.msra.mxu0 0.0
        %1514 = vmatprep.subr.mxu0 0.0
        %1515 = vmatpush1.xpose.msra.mxu0 0.0
        %1516 = vmatprep.subr.mxu0 0.0
        %1517 = vmatpush1.xpose.msra.mxu0 0.0
        %1518 = vmatprep.subr.mxu0 0.0
        %1519 = vmatpush1.xpose.msra.mxu0 0.0
        %1520 = vmatprep.subr.mxu0 0.0
        %1521 = vmatpush1.xpose.msra.mxu0 0.0
        %1522 = vmatprep.subr.mxu0 0.0
        %1523 = vmatpush1.xpose.msra.mxu0 0.0
        %1524 = vmatprep.subr.mxu0 0.0
        %1525 = vmatpush1.xpose.msra.mxu0 0.0
        %1526 = vmatprep.subr.mxu0 0.0
        %1527 = vmatpush1.xpose.msra.mxu0 0.0
        %1528 = vmatprep.subr.mxu0 0.0
        %1529 = vmatpush1.xpose.msra.mxu0 0.0
        %1530 = vmatprep.subr.mxu0 0.0
        %1531 = vmatpush1.xpose.msra.mxu0 0.0
        %1532 = vmatprep.subr.mxu0 0.0
        %1533 = vmatpush1.xpose.msra.mxu0 0.0
        %1534 = vmatprep.subr.mxu0 0.0
        %1535 = vmatpush1.xpose.msra.mxu0 0.0
        %1536 = vmatprep.subr.mxu0 0.0
        %1537 = vmatpush1.xpose.msra.mxu0 0.0
        %1538 = vmatprep.subr.mxu0 0.0
        %1539 = vmatpush1.xpose.msra.mxu0 0.0
        %1540 = vmatprep.subr.mxu0 0.0
        %1541 = vmatpush1.xpose.msra.mxu0 0.0
        %1542 = vmatprep.subr.mxu0 0.0
        %1543 = vmatpush1.xpose.msra.mxu0 0.0
        %1544 = vmatprep.subr.mxu0 0.0
        %1545 = vmatpush1.xpose.msra.mxu0 0.0
        %1546 = vmatprep.subr.mxu0 0.0
        %1547 = vmatpush1.xpose.msra.mxu0 0.0
        %1548 = vmatprep.subr.mxu0 0.0
        %1549 = vmatpush1.xpose.msra.mxu0 0.0
        %1550 = vmatprep.subr.mxu0 0.0
        %1551 = vmatpush1.xpose.msra.mxu0 0.0
        %1552 = vmatprep.subr.mxu0 0.0
        %1553 = vmatpush1.xpose.msra.mxu0 0.0
        %1554 = vmatprep.subr.mxu0 0.0
        %1555 = vmatpush1.xpose.msra.mxu0 0.0
        %1556 = vmatprep.subr.mxu0 0.0
        %1557 = vmatpush1.xpose.msra.mxu0 0.0
        %1558 = vmatprep.subr.mxu0 0.0
        %1559 = vmatpush1.xpose.msra.mxu0 0.0
        %1560 = vmatprep.subr.mxu0 0.0
        %1561 = vmatpush1.xpose.msra.mxu0 0.0
        %1562 = vmatprep.subr.mxu0 0.0
        %1563 = vmatpush1.xpose.msra.mxu0 0.0
        %1564 = vmatprep.subr.mxu0 0.0
        %1565 = vmatpush1.xpose.msra.mxu0 0.0
        %1566 = vmatprep.subr.mxu0 0.0
        %1567 = vmatpush1.xpose.msra.mxu0 0.0
        %1568 = vmatprep.subr.mxu0 0.0
        %1569 = vmatpush1.xpose.msra.mxu0 0.0
        %1570 = vmatprep.mubr.f32.mxu0 0.0
        %1571 = vmatmul.mubr.f32.gmra.mrb[0].mxu0 %v1504
        %v1572 = vpop.f32.mrb[0].mxu0
        %v1573 = vadd.f32 0.0, %v1572
        %v1574 = vpop.f32.mrb[0].mxu0
        %1575 = vdwg.mxu0
        %v1576 = vmul.f32 %v1573, 0.25
        %v1577 = vadd.f32 %v1576, %v658
        %v1578 = vsel %vm924, %v1577, -inf
        %1579 = vmax.xlane.f32.xlu0 %v1578
        %v1580 = vpop.xlane.xlu0 %1579
        %v1581 = vsub.f32 %v1577, %v1580
        %v1582 = vmul.f32 %v1581, 1.442695
        %v1583 = vpow.pop %v1582
        %v1584 = vsel %vm924, %v1583, 0.0
        %1585 = vadd.xlane.f32.xlu0 %v1584
        %v1586 = vpop.xlane.xlu0 %1585
        %v1587 = vrcp.pop %v1586
        %v1588 = vmul.f32 %v1583, %v1587
        %v1590 = vsel %vm924, %v1588, 0
        %1592 = vmatprep.subr.mxu0 0.0
        %1593 = vmatpush1.msra.mxu0 %v1409
        %1594 = vmatprep.subr.mxu0 0.0
        %1595 = vmatpush1.msra.mxu0 0.0
        %1596 = vmatprep.subr.mxu0 0.0
        %1597 = vmatpush1.msra.mxu0 0.0
        %1598 = vmatprep.subr.mxu0 0.0
        %1599 = vmatpush1.msra.mxu0 0.0
        %1600 = vmatprep.subr.mxu0 0.0
        %1601 = vmatpush1.msra.mxu0 0.0
        %1602 = vmatprep.subr.mxu0 0.0
        %1603 = vmatpush1.msra.mxu0 0.0
        %1604 = vmatprep.subr.mxu0 0.0
        %1605 = vmatpush1.msra.mxu0 0.0
        %1606 = vmatprep.subr.mxu0 0.0
        %1607 = vmatpush1.msra.mxu0 0.0
        %1608 = vmatprep.subr.mxu0 0.0
        %1609 = vmatpush1.msra.mxu0 0.0
        %1610 = vmatprep.subr.mxu0 0.0
        %1611 = vmatpush1.msra.mxu0 0.0
        %1612 = vmatprep.subr.mxu0 0.0
        %1613 = vmatpush1.msra.mxu0 0.0
        %1614 = vmatprep.subr.mxu0 0.0
        %1615 = vmatpush1.msra.mxu0 0.0
        %1616 = vmatprep.subr.mxu0 0.0
        %1617 = vmatpush1.msra.mxu0 0.0
        %1618 = vmatprep.subr.mxu0 0.0
        %1619 = vmatpush1.msra.mxu0 0.0
        %1620 = vmatprep.subr.mxu0 0.0
        %1621 = vmatpush1.msra.mxu0 0.0
        %1622 = vmatprep.subr.mxu0 0.0
        %1623 = vmatpush1.msra.mxu0 0.0
        %1624 = vmatprep.subr.mxu0 0.0
        %1625 = vmatpush1.msra.mxu0 0.0
        %1626 = vmatprep.subr.mxu0 0.0
        %1627 = vmatpush1.msra.mxu0 0.0
        %1628 = vmatprep.subr.mxu0 0.0
        %1629 = vmatpush1.msra.mxu0 0.0
        %1630 = vmatprep.subr.mxu0 0.0
        %1631 = vmatpush1.msra.mxu0 0.0
        %1632 = vmatprep.subr.mxu0 0.0
        %1633 = vmatpush1.msra.mxu0 0.0
        %1634 = vmatprep.subr.mxu0 0.0
        %1635 = vmatpush1.msra.mxu0 0.0
        %1636 = vmatprep.subr.mxu0 0.0
        %1637 = vmatpush1.msra.mxu0 0.0
        %1638 = vmatprep.subr.mxu0 0.0
        %1639 = vmatpush1.msra.mxu0 0.0
        %1640 = vmatprep.subr.mxu0 0.0
        %1641 = vmatpush1.msra.mxu0 0.0
        %1642 = vmatprep.subr.mxu0 0.0
        %1643 = vmatpush1.msra.mxu0 0.0
        %1644 = vmatprep.subr.mxu0 0.0
        %1645 = vmatpush1.msra.mxu0 0.0
        %1646 = vmatprep.subr.mxu0 0.0
        %1647 = vmatpush1.msra.mxu0 0.0
        %1648 = vmatprep.subr.mxu0 0.0
        %1649 = vmatpush1.msra.mxu0 0.0
        %1650 = vmatprep.subr.mxu0 0.0
        %1651 = vmatpush1.msra.mxu0 0.0
        %1652 = vmatprep.subr.mxu0 0.0
        %1653 = vmatpush1.msra.mxu0 0.0
        %1654 = vmatprep.subr.mxu0 0.0
        %1655 = vmatpush1.msra.mxu0 0.0
        %1656 = vmatprep.mubr.f32.mxu0 0.0
        %1657 = vmatmul.mubr.f32.gmra.mrb[0].mxu0 %v1590
        %v1658 = vpop.f32.mrb[0].mxu0
        %v1659 = vadd.f32 0.0, %v1658
        %v1660 = vpop.f32.mrb[0].mxu0
        %1661 = vdwg.mxu0
        %1663 = vrot.lane.b32.xlu0 %v1294, 16
        %v1664 = vpop.permute.xlu0 %1663
        %1667 = vrot.lane.b32.xlu0 %v1481, 32
        %v1668 = vpop.permute.xlu0 %1667
        %1671 = vrot.lane.b32.xlu0 %v1659, 48
        %v1672 = vpop.permute.xlu0 %1671
        %v1674 = vsel %vm959, %v1119, %v1664
        %vm1675 = vcmask 261120
        %v1676 = vsel %vm1675, %v1674, %v1668
        %vm1677 = vcmask 392192
        %v1678 = vsel %vm1677, %v1676, %v1672
        %v1679 = vld [vmem:[%s624] sm:$0xff]
        %v1680 = vld [vmem:[%s624 + $0x8] sm:$0xff]
        %v1681 = vld [vmem:[%s624 + $0x10] sm:$0xff]
        %v1682 = vld [vmem:[%s624 + $0x18] sm:$0xff]
        %v1683 = vld [vmem:[%s624 + $0x20] sm:$0xff]
        %v1684 = vld [vmem:[%s624 + $0x28] sm:$0xff]
        %v1685 = vld [vmem:[%s624 + $0x30] sm:$0xff]
        %v1686 = vld [vmem:[%s624 + $0x38] sm:$0xff]
        %v1688 = vsel %vm661, %v1678, 0
        %1690 = vmatprep.subr.mxu0 0.0
        %1691 = vmatpush1.msra.mxu0 %v1679
        %1692 = vmatprep.subr.mxu0 0.0
        %1693 = vmatpush1.msra.mxu0 %v1680
        %1694 = vmatprep.subr.mxu0 0.0
        %1695 = vmatpush1.msra.mxu0 %v1681
        %1696 = vmatprep.subr.mxu0 0.0
        %1697 = vmatpush1.msra.mxu0 %v1682
        %1698 = vmatprep.subr.mxu0 0.0
        %1699 = vmatpush1.msra.mxu0 %v1683
        %1700 = vmatprep.subr.mxu0 0.0
        %1701 = vmatpush1.msra.mxu0 %v1684
        %1702 = vmatprep.subr.mxu0 0.0
        %1703 = vmatpush1.msra.mxu0 %v1685
        %1704 = vmatprep.subr.mxu0 0.0
        %1705 = vmatpush1.msra.mxu0 %v1686
        %1706 = vmatprep.subr.mxu0 0.0
        %1707 = vmatpush1.msra.mxu0 0.0
        %1708 = vmatprep.subr.mxu0 0.0
        %1709 = vmatpush1.msra.mxu0 0.0
        %1710 = vmatprep.subr.mxu0 0.0
        %1711 = vmatpush1.msra.mxu0 0.0
        %1712 = vmatprep.subr.mxu0 0.0
        %1713 = vmatpush1.msra.mxu0 0.0
        %1714 = vmatprep.subr.mxu0 0.0
        %1715 = vmatpush1.msra.mxu0 0.0
        %1716 = vmatprep.subr.mxu0 0.0
        %1717 = vmatpush1.msra.mxu0 0.0
        %1718 = vmatprep.subr.mxu0 0.0
        %1719 = vmatpush1.msra.mxu0 0.0
        %1720 = vmatprep.subr.mxu0 0.0
        %1721 = vmatpush1.msra.mxu0 0.0
        %1722 = vmatprep.subr.mxu0 0.0
        %1723 = vmatpush1.msra.mxu0 0.0
        %1724 = vmatprep.subr.mxu0 0.0
        %1725 = vmatpush1.msra.mxu0 0.0
        %1726 = vmatprep.subr.mxu0 0.0
        %1727 = vmatpush1.msra.mxu0 0.0
        %1728 = vmatprep.subr.mxu0 0.0
        %1729 = vmatpush1.msra.mxu0 0.0
        %1730 = vmatprep.subr.mxu0 0.0
        %1731 = vmatpush1.msra.mxu0 0.0
        %1732 = vmatprep.subr.mxu0 0.0
        %1733 = vmatpush1.msra.mxu0 0.0
        %1734 = vmatprep.subr.mxu0 0.0
        %1735 = vmatpush1.msra.mxu0 0.0
        %1736 = vmatprep.subr.mxu0 0.0
        %1737 = vmatpush1.msra.mxu0 0.0
        %1738 = vmatprep.subr.mxu0 0.0
        %1739 = vmatpush1.msra.mxu0 0.0
        %1740 = vmatprep.subr.mxu0 0.0
        %1741 = vmatpush1.msra.mxu0 0.0
        %1742 = vmatprep.subr.mxu0 0.0
        %1743 = vmatpush1.msra.mxu0 0.0
        %1744 = vmatprep.subr.mxu0 0.0
        %1745 = vmatpush1.msra.mxu0 0.0
        %1746 = vmatprep.subr.mxu0 0.0
        %1747 = vmatpush1.msra.mxu0 0.0
        %1748 = vmatprep.subr.mxu0 0.0
        %1749 = vmatpush1.msra.mxu0 0.0
        %1750 = vmatprep.subr.mxu0 0.0
        %1751 = vmatpush1.msra.mxu0 0.0
        %1752 = vmatprep.subr.mxu0 0.0
        %1753 = vmatpush1.msra.mxu0 0.0
        %1754 = vmatprep.mubr.f32.mxu0 0.0
        %1755 = vmatmul.mubr.f32.gmra.mrb[0].mxu0 %v1688
        %v1756 = vpop.f32.mrb[0].mxu0
        %v1757 = vadd.f32 0.0, %v1756
        %v1758 = vpop.f32.mrb[0].mxu0
        %1759 = vdwg.mxu0
        %v1760 = vadd.f32 %v650, %v1757
        %v1761 = vld [vmem:[%s627] sm:$0x1]
        %v1762 = vmul.f32 %v1760, %v1760
        %v1763 = vsel %vm661, %v1762, 0.0
        %1764 = vadd.xlane.f32.xlu0 %v1763
        %v1765 = vpop.xlane.xlu0 %1764
        %v1766 = vmul.f32 %v1765, %v665
        %v1767 = vadd.f32 %v1766, 1e-05
        %v1768 = vrsqrt.pop %v1767
        %v1769 = vmul.f32 %v1760, %v1768
        %v1771 = vlaneseq
        %v1772 = vshrl.u32 %v1771, 7
        %v1773 = vsub.s32 0, %v1772
        %v1774 = vrot.slane %v1761, %v1773
        %v1776 = vmul.f32 %v1769, %v1774
        %v1777 = vld [vmem:[%s632] sm:$0xff]
        %v1778 = vld [vmem:[%s632 + $0x8] sm:$0xff]
        %v1779 = vld [vmem:[%s632 + $0x10] sm:$0xff]
        %v1780 = vld [vmem:[%s632 + $0x18] sm:$0xff]
        %v1781 = vld [vmem:[%s632 + $0x20] sm:$0xff]
        %v1782 = vld [vmem:[%s632 + $0x28] sm:$0xff]
        %v1783 = vld [vmem:[%s632 + $0x30] sm:$0xff]
        %v1784 = vld [vmem:[%s632 + $0x38] sm:$0xff]
        %v1786 = vsel %vm661, %v1776, 0
        %1788 = vmatprep.subr.mxu0 0.0
        %1789 = vmatpush1.msra.mxu0 %v1777
        %1790 = vmatprep.subr.mxu0 0.0
        %1791 = vmatpush1.msra.mxu0 %v1778
        %1792 = vmatprep.subr.mxu0 0.0
        %1793 = vmatpush1.msra.mxu0 %v1779
        %1794 = vmatprep.subr.mxu0 0.0
        %1795 = vmatpush1.msra.mxu0 %v1780
        %1796 = vmatprep.subr.mxu0 0.0
        %1797 = vmatpush1.msra.mxu0 %v1781
        %1798 = vmatprep.subr.mxu0 0.0
        %1799 = vmatpush1.msra.mxu0 %v1782
        %1800 = vmatprep.subr.mxu0 0.0
        %1801 = vmatpush1.msra.mxu0 %v1783
        %1802 = vmatprep.subr.mxu0 0.0
        %1803 = vmatpush1.msra.mxu0 %v1784
        %1804 = vmatprep.subr.mxu0 0.0
        %1805 = vmatpush1.msra.mxu0 0.0
        %1806 = vmatprep.subr.mxu0 0.0
        %1807 = vmatpush1.msra.mxu0 0.0
        %1808 = vmatprep.subr.mxu0 0.0
        %1809 = vmatpush1.msra.mxu0 0.0
        %1810 = vmatprep.subr.mxu0 0.0
        %1811 = vmatpush1.msra.mxu0 0.0
        %1812 = vmatprep.subr.mxu0 0.0
        %1813 = vmatpush1.msra.mxu0 0.0
        %1814 = vmatprep.subr.mxu0 0.0
        %1815 = vmatpush1.msra.mxu0 0.0
        %1816 = vmatprep.subr.mxu0 0.0
        %1817 = vmatpush1.msra.mxu0 0.0
        %1818 = vmatprep.subr.mxu0 0.0
        %1819 = vmatpush1.msra.mxu0 0.0
        %1820 = vmatprep.subr.mxu0 0.0
        %1821 = vmatpush1.msra.mxu0 0.0
        %1822 = vmatprep.subr.mxu0 0.0
        %1823 = vmatpush1.msra.mxu0 0.0
        %1824 = vmatprep.subr.mxu0 0.0
        %1825 = vmatpush1.msra.mxu0 0.0
        %1826 = vmatprep.subr.mxu0 0.0
        %1827 = vmatpush1.msra.mxu0 0.0
        %1828 = vmatprep.subr.mxu0 0.0
        %1829 = vmatpush1.msra.mxu0 0.0
        %1830 = vmatprep.subr.mxu0 0.0
        %1831 = vmatpush1.msra.mxu0 0.0
        %1832 = vmatprep.subr.mxu0 0.0
        %1833 = vmatpush1.msra.mxu0 0.0
        %1834 = vmatprep.subr.mxu0 0.0
        %1835 = vmatpush1.msra.mxu0 0.0
        %1836 = vmatprep.subr.mxu0 0.0
        %1837 = vmatpush1.msra.mxu0 0.0
        %1838 = vmatprep.subr.mxu0 0.0
        %1839 = vmatpush1.msra.mxu0 0.0
        %1840 = vmatprep.subr.mxu0 0.0
        %1841 = vmatpush1.msra.mxu0 0.0
        %1842 = vmatprep.subr.mxu0 0.0
        %1843 = vmatpush1.msra.mxu0 0.0
        %1844 = vmatprep.subr.mxu0 0.0
        %1845 = vmatpush1.msra.mxu0 0.0
        %1846 = vmatprep.subr.mxu0 0.0
        %1847 = vmatpush1.msra.mxu0 0.0
        %1848 = vmatprep.subr.mxu0 0.0
        %1849 = vmatpush1.msra.mxu0 0.0
        %1850 = vmatprep.subr.mxu0 0.0
        %1851 = vmatpush1.msra.mxu0 0.0
        %1852 = vmatprep.mubr.f32.mxu0 0.0
        %1853 = vmatmul.mubr.f32.gmra.mrb[0].mxu0 %v1786
        %v1854 = vpop.f32.mrb[0].mxu0
        %v1855 = vadd.f32 0.0, %v1854
        %v1856 = vpop.f32.mrb[0].mxu0
        %1857 = vdwg.mxu0
        %v1858 = vld [vmem:[%s637] sm:$0xff]
        %v1859 = vld [vmem:[%s637 + $0x8] sm:$0xff]
        %v1860 = vld [vmem:[%s637 + $0x10] sm:$0xff]
        %v1861 = vld [vmem:[%s637 + $0x18] sm:$0xff]
        %v1862 = vld [vmem:[%s637 + $0x20] sm:$0xff]
        %v1863 = vld [vmem:[%s637 + $0x28] sm:$0xff]
        %v1864 = vld [vmem:[%s637 + $0x30] sm:$0xff]
        %v1865 = vld [vmem:[%s637 + $0x38] sm:$0xff]
        %1866 = vmatprep.subr.mxu0 0.0
        %1867 = vmatpush1.msra.mxu0 %v1858
        %1868 = vmatprep.subr.mxu0 0.0
        %1869 = vmatpush1.msra.mxu0 %v1859
        %1870 = vmatprep.subr.mxu0 0.0
        %1871 = vmatpush1.msra.mxu0 %v1860
        %1872 = vmatprep.subr.mxu0 0.0
        %1873 = vmatpush1.msra.mxu0 %v1861
        %1874 = vmatprep.subr.mxu0 0.0
        %1875 = vmatpush1.msra.mxu0 %v1862
        %1876 = vmatprep.subr.mxu0 0.0
        %1877 = vmatpush1.msra.mxu0 %v1863
        %1878 = vmatprep.subr.mxu0 0.0
        %1879 = vmatpush1.msra.mxu0 %v1864
        %1880 = vmatprep.subr.mxu0 0.0
        %1881 = vmatpush1.msra.mxu0 %v1865
        %1882 = vmatprep.subr.mxu0 0.0
        %1883 = vmatpush1.msra.mxu0 0.0
        %1884 = vmatprep.subr.mxu0 0.0
        %1885 = vmatpush1.msra.mxu0 0.0
        %1886 = vmatprep.subr.mxu0 0.0
        %1887 = vmatpush1.msra.mxu0 0.0
        %1888 = vmatprep.subr.mxu0 0.0
        %1889 = vmatpush1.msra.mxu0 0.0
        %1890 = vmatprep.subr.mxu0 0.0
        %1891 = vmatpush1.msra.mxu0 0.0
        %1892 = vmatprep.subr.mxu0 0.0
        %1893 = vmatpush1.msra.mxu0 0.0
        %1894 = vmatprep.subr.mxu0 0.0
        %1895 = vmatpush1.msra.mxu0 0.0
        %1896 = vmatprep.subr.mxu0 0.0
        %1897 = vmatpush1.msra.mxu0 0.0
        %1898 = vmatprep.subr.mxu0 0.0
        %1899 = vmatpush1.msra.mxu0 0.0
        %1900 = vmatprep.subr.mxu0 0.0
        %1901 = vmatpush1.msra.mxu0 0.0
        %1902 = vmatprep.subr.mxu0 0.0
        %1903 = vmatpush1.msra.mxu0 0.0
        %1904 = vmatprep.subr.mxu0 0.0
        %1905 = vmatpush1.msra.mxu0 0.0
        %1906 = vmatprep.subr.mxu0 0.0
        %1907 = vmatpush1.msra.mxu0 0.0
        %1908 = vmatprep.subr.mxu0 0.0
        %1909 = vmatpush1.msra.mxu0 0.0
        %1910 = vmatprep.subr.mxu0 0.0
        %1911 = vmatpush1.msra.mxu0 0.0
        %1912 = vmatprep.subr.mxu0 0.0
        %1913 = vmatpush1.msra.mxu0 0.0
        %1914 = vmatprep.subr.mxu0 0.0
        %1915 = vmatpush1.msra.mxu0 0.0
        %1916 = vmatprep.subr.mxu0 0.0
        %1917 = vmatpush1.msra.mxu0 0.0
        %1918 = vmatprep.subr.mxu0 0.0
        %1919 = vmatpush1.msra.mxu0 0.0
        %1920 = vmatprep.subr.mxu0 0.0
        %1921 = vmatpush1.msra.mxu0 0.0
        %1922 = vmatprep.subr.mxu0 0.0
        %1923 = vmatpush1.msra.mxu0 0.0
        %1924 = vmatprep.subr.mxu0 0.0
        %1925 = vmatpush1.msra.mxu0 0.0
        %1926 = vmatprep.subr.mxu0 0.0
        %1927 = vmatpush1.msra.mxu0 0.0
        %1928 = vmatprep.subr.mxu0 0.0
        %1929 = vmatpush1.msra.mxu0 0.0
        %1930 = vmatprep.mubr.f32.mxu0 0.0
        %1931 = vmatmul.mubr.f32.gmra.mrb[0].mxu0 %v1786
        %v1932 = vpop.f32.mrb[0].mxu0
        %v1933 = vadd.f32 0.0, %v1932
        %v1934 = vpop.f32.mrb[0].mxu0
        %1935 = vdwg.mxu0
        %v1936 = vxor.u32 %v1855, 2147483648
        %v1937 = vmul.f32 %v1936, 1.442695
        %v1938 = vpow.pop %v1937
        %v1939 = vadd.f32 %v1938, 1.0
        %v1940 = vrcp.pop %v1939
        %v1941 = vmul.f32 1.0, %v1940
        %v1942 = vmul.f32 %v1855, %v1941
        %v1943 = vmul.f32 %v1942, %v1933
        %v1944 = vld [vmem:[%s642] sm:$0xff]
        %v1945 = vld [vmem:[%s642 + $0x8] sm:$0xff]
        %v1946 = vld [vmem:[%s642 + $0x10] sm:$0xff]
        %v1947 = vld [vmem:[%s642 + $0x18] sm:$0xff]
        %v1948 = vld [vmem:[%s642 + $0x20] sm:$0xff]
        %v1949 = vld [vmem:[%s642 + $0x28] sm:$0xff]
        %v1950 = vld [vmem:[%s642 + $0x30] sm:$0xff]
        %v1951 = vld [vmem:[%s642 + $0x38] sm:$0xff]
        %v1952 = vld [vmem:[%s642 + $0x40] sm:$0xff]
        %v1953 = vld [vmem:[%s642 + $0x48] sm:$0xff]
        %v1954 = vld [vmem:[%s642 + $0x50] sm:$0xff]
        %v1955 = vld [vmem:[%s642 + $0x58] sm:$0xff]
        %v1956 = vld [vmem:[%s642 + $0x60] sm:$0xff]
        %v1957 = vld [vmem:[%s642 + $0x68] sm:$0xff]
        %v1958 = vld [vmem:[%s642 + $0x70] sm:$0xff]
        %v1959 = vld [vmem:[%s642 + $0x78] sm:$0xff]
        %1960 = vmatprep.subr.mxu0 0.0
        %1961 = vmatpush1.msra.mxu0 %v1944
        %1962 = vmatprep.subr.mxu0 0.0
        %1963 = vmatpush1.msra.mxu0 %v1945
        %1964 = vmatprep.subr.mxu0 0.0
        %1965 = vmatpush1.msra.mxu0 %v1946
        %1966 = vmatprep.subr.mxu0 0.0
        %1967 = vmatpush1.msra.mxu0 %v1947
        %1968 = vmatprep.subr.mxu0 0.0
        %1969 = vmatpush1.msra.mxu0 %v1948
        %1970 = vmatprep.subr.mxu0 0.0
        %1971 = vmatpush1.msra.mxu0 %v1949
        %1972 = vmatprep.subr.mxu0 0.0
        %1973 = vmatpush1.msra.mxu0 %v1950
        %1974 = vmatprep.subr.mxu0 0.0
        %1975 = vmatpush1.msra.mxu0 %v1951
        %1976 = vmatprep.subr.mxu0 0.0
        %1977 = vmatpush1.msra.mxu0 %v1952
        %1978 = vmatprep.subr.mxu0 0.0
        %1979 = vmatpush1.msra.mxu0 %v1953
        %1980 = vmatprep.subr.mxu0 0.0
        %1981 = vmatpush1.msra.mxu0 %v1954
        %1982 = vmatprep.subr.mxu0 0.0
        %1983 = vmatpush1.msra.mxu0 %v1955
        %1984 = vmatprep.subr.mxu0 0.0
        %1985 = vmatpush1.msra.mxu0 %v1956
        %1986 = vmatprep.subr.mxu0 0.0
        %1987 = vmatpush1.msra.mxu0 %v1957
        %1988 = vmatprep.subr.mxu0 0.0
        %1989 = vmatpush1.msra.mxu0 %v1958
        %1990 = vmatprep.subr.mxu0 0.0
        %1991 = vmatpush1.msra.mxu0 %v1959
        %1992 = vmatprep.subr.mxu0 0.0
        %1993 = vmatpush1.msra.mxu0 0.0
        %1994 = vmatprep.subr.mxu0 0.0
        %1995 = vmatpush1.msra.mxu0 0.0
        %1996 = vmatprep.subr.mxu0 0.0
        %1997 = vmatpush1.msra.mxu0 0.0
        %1998 = vmatprep.subr.mxu0 0.0
        %1999 = vmatpush1.msra.mxu0 0.0
        %2000 = vmatprep.subr.mxu0 0.0
        %2001 = vmatpush1.msra.mxu0 0.0
        %2002 = vmatprep.subr.mxu0 0.0
        %2003 = vmatpush1.msra.mxu0 0.0
        %2004 = vmatprep.subr.mxu0 0.0
        %2005 = vmatpush1.msra.mxu0 0.0
        %2006 = vmatprep.subr.mxu0 0.0
        %2007 = vmatpush1.msra.mxu0 0.0
        %2008 = vmatprep.subr.mxu0 0.0
        %2009 = vmatpush1.msra.mxu0 0.0
        %2010 = vmatprep.subr.mxu0 0.0
        %2011 = vmatpush1.msra.mxu0 0.0
        %2012 = vmatprep.subr.mxu0 0.0
        %2013 = vmatpush1.msra.mxu0 0.0
        %2014 = vmatprep.subr.mxu0 0.0
        %2015 = vmatpush1.msra.mxu0 0.0
        %2016 = vmatprep.subr.mxu0 0.0
        %2017 = vmatpush1.msra.mxu0 0.0
        %2018 = vmatprep.subr.mxu0 0.0
        %2019 = vmatpush1.msra.mxu0 0.0
        %2020 = vmatprep.subr.mxu0 0.0
        %2021 = vmatpush1.msra.mxu0 0.0
        %2022 = vmatprep.subr.mxu0 0.0
        %2023 = vmatpush1.msra.mxu0 0.0
        %2024 = vmatprep.mubr.f32.mxu0 0.0
        %2025 = vmatmul.mubr.f32.gmra.mrb[0].mxu0 %v1943
        %v2026 = vpop.f32.mrb[0].mxu0
        %v2027 = vadd.f32 0.0, %v2026
        %v2028 = vpop.f32.mrb[0].mxu0
        %2029 = vdwg.mxu0
        %v2030 = vadd.f32 %v1760, %v2027
        %2031 = vst.msk [vmem:[#allocation2] sm:$0xff] %vm661, %v2030
        %p2032 = scmp.eq.s32.totalorder %s33, 1
        // Predicated region
        $region81: #{language_model_forward.1} parent=75 // pred_check
          %p2033 = pneg %p2032
        $region82: #{language_model_forward.1} parent=75 // pred_check_branch
          %2035 = sbr.rel (%p2033) target = $region84
        $region83: #{language_model_forward.1} parent=75 // pred_region
          %v2036 = vld [vmem:[%s12] sm:$0x1]
          %v2037 = vmul.f32 %v2030, %v2030
          %v2038 = vsel %vm661, %v2037, 0.0
          %2039 = vadd.xlane.f32.xlu0 %v2038
          %v2040 = vpop.xlane.xlu0 %2039
          %v2041 = vmul.f32 %v2040, %v665
          %v2042 = vadd.f32 %v2041, 1e-05
          %v2043 = vrsqrt.pop %v2042
          %v2044 = vmul.f32 %v2030, %v2043
          %v2046 = vlaneseq
          %v2047 = vshrl.u32 %v2046, 7
          %v2048 = vsub.s32 0, %v2047
          %v2049 = vrot.slane %v2036, %v2048
          %v2051 = vmul.f32 %v2044, %v2049
          %v2052 = vld [vmem:[%s13] sm:$0xff]
          %v2053 = vld [vmem:[%s13 + $0x8] sm:$0xff]
          %v2054 = vld [vmem:[%s13 + $0x10] sm:$0xff]
          %v2055 = vld [vmem:[%s13 + $0x18] sm:$0xff]
          %v2056 = vld [vmem:[%s13 + $0x20] sm:$0xff]
          %v2057 = vld [vmem:[%s13 + $0x28] sm:$0xff]
          %v2058 = vld [vmem:[%s13 + $0x30] sm:$0xff]
          %v2059 = vld [vmem:[%s13 + $0x38] sm:$0xff]
          %v2060 = vld [vmem:[%s13 + $0x40] sm:$0xff]
          %v2061 = vld [vmem:[%s13 + $0x48] sm:$0xff]
          %v2062 = vld [vmem:[%s13 + $0x50] sm:$0xff]
          %v2063 = vld [vmem:[%s13 + $0x58] sm:$0xff]
          %v2064 = vld [vmem:[%s13 + $0x60] sm:$0xff]
          %v2065 = vld [vmem:[%s13 + $0x68] sm:$0xff]
          %v2066 = vld [vmem:[%s13 + $0x70] sm:$0xff]
          %v2067 = vld [vmem:[%s13 + $0x78] sm:$0xff]
          %v2069 = vsel %vm661, %v2051, 0
          %v2072 = vsel %vm661, %v2052, 0
          %v2075 = vsel %vm661, %v2053, 0
          %v2078 = vsel %vm661, %v2054, 0
          %v2081 = vsel %vm661, %v2055, 0
          %v2084 = vsel %vm661, %v2056, 0
          %v2087 = vsel %vm661, %v2057, 0
          %v2090 = vsel %vm661, %v2058, 0
          %v2093 = vsel %vm661, %v2059, 0
          %v2096 = vsel %vm661, %v2060, 0
          %v2099 = vsel %vm661, %v2061, 0
          %v2102 = vsel %vm661, %v2062, 0
          %v2105 = vsel %vm661, %v2063, 0
          %v2108 = vsel %vm661, %v2064, 0
          %v2111 = vsel %vm661, %v2065, 0
          %v2114 = vsel %vm661, %v2066, 0
          %v2117 = vsel %vm661, %v2067, 0
          %2119 = vmatprep.subr.mxu0 0.0
          %2120 = vmatpush1.xpose.msra.mxu0 %v2072
          %2121 = vmatprep.subr.mxu0 0.0
          %2122 = vmatpush1.xpose.msra.mxu0 %v2075
          %2123 = vmatprep.subr.mxu0 0.0
          %2124 = vmatpush1.xpose.msra.mxu0 %v2078
          %2125 = vmatprep.subr.mxu0 0.0
          %2126 = vmatpush1.xpose.msra.mxu0 %v2081
          %2127 = vmatprep.subr.mxu0 0.0
          %2128 = vmatpush1.xpose.msra.mxu0 %v2084
          %2129 = vmatprep.subr.mxu0 0.0
          %2130 = vmatpush1.xpose.msra.mxu0 %v2087
          %2131 = vmatprep.subr.mxu0 0.0
          %2132 = vmatpush1.xpose.msra.mxu0 %v2090
          %2133 = vmatprep.subr.mxu0 0.0
          %2134 = vmatpush1.xpose.msra.mxu0 %v2093
          %2135 = vmatprep.subr.mxu0 0.0
          %2136 = vmatpush1.xpose.msra.mxu0 %v2096
          %2137 = vmatprep.subr.mxu0 0.0
          %2138 = vmatpush1.xpose.msra.mxu0 %v2099
          %2139 = vmatprep.subr.mxu0 0.0
          %2140 = vmatpush1.xpose.msra.mxu0 %v2102
          %2141 = vmatprep.subr.mxu0 0.0
          %2142 = vmatpush1.xpose.msra.mxu0 %v2105
          %2143 = vmatprep.subr.mxu0 0.0
          %2144 = vmatpush1.xpose.msra.mxu0 %v2108
          %2145 = vmatprep.subr.mxu0 0.0
          %2146 = vmatpush1.xpose.msra.mxu0 %v2111
          %2147 = vmatprep.subr.mxu0 0.0
          %2148 = vmatpush1.xpose.msra.mxu0 %v2114
          %2149 = vmatprep.subr.mxu0 0.0
          %2150 = vmatpush1.xpose.msra.mxu0 %v2117
          %2151 = vmatprep.subr.mxu0 0.0
          %2152 = vmatpush1.xpose.msra.mxu0 0.0
          %2153 = vmatprep.subr.mxu0 0.0
          %2154 = vmatpush1.xpose.msra.mxu0 0.0
          %2155 = vmatprep.subr.mxu0 0.0
          %2156 = vmatpush1.xpose.msra.mxu0 0.0
          %2157 = vmatprep.subr.mxu0 0.0
          %2158 = vmatpush1.xpose.msra.mxu0 0.0
          %2159 = vmatprep.subr.mxu0 0.0
          %2160 = vmatpush1.xpose.msra.mxu0 0.0
          %2161 = vmatprep.subr.mxu0 0.0
          %2162 = vmatpush1.xpose.msra.mxu0 0.0
          %2163 = vmatprep.subr.mxu0 0.0
          %2164 = vmatpush1.xpose.msra.mxu0 0.0
          %2165 = vmatprep.subr.mxu0 0.0
          %2166 = vmatpush1.xpose.msra.mxu0 0.0
          %2167 = vmatprep.subr.mxu0 0.0
          %2168 = vmatpush1.xpose.msra.mxu0 0.0
          %2169 = vmatprep.subr.mxu0 0.0
          %2170 = vmatpush1.xpose.msra.mxu0 0.0
          %2171 = vmatprep.subr.mxu0 0.0
          %2172 = vmatpush1.xpose.msra.mxu0 0.0
          %2173 = vmatprep.subr.mxu0 0.0
          %2174 = vmatpush1.xpose.msra.mxu0 0.0
          %2175 = vmatprep.subr.mxu0 0.0
          %2176 = vmatpush1.xpose.msra.mxu0 0.0
          %2177 = vmatprep.subr.mxu0 0.0
          %2178 = vmatpush1.xpose.msra.mxu0 0.0
          %2179 = vmatprep.subr.mxu0 0.0
          %2180 = vmatpush1.xpose.msra.mxu0 0.0
          %2181 = vmatprep.subr.mxu0 0.0
          %2182 = vmatpush1.xpose.msra.mxu0 0.0
          %2183 = vmatprep.mubr.f32.mxu0 0.0
          %2184 = vmatmul.mubr.f32.gmra.mrb[0].mxu0 %v2069
          %v2185 = vpop.f32.mrb[0].mxu0
          %v2186 = vadd.f32 0.0, %v2185
          %v2187 = vpop.f32.mrb[0].mxu0
          %2188 = vdwg.mxu0
          %2189 = vst [vmem:[%s597] sm:$0xff] %v2186
        $region84: #{language_model_forward.1} parent=75 // pred_fallthru
          _
        %s2190 = sand.u32 %s392, 1
        %s2191 = scalar_lea.sflag [#allocation4], %s2190
        %s2192 = sand.u32 %s392, 1
        %s2193 = smul.addr %s2192, 8
        %s2194 = scalar_lea.vmem [#allocation3], %s2193
        // Predicated region
        $region85: #{language_model_forward.1} parent=75 // pred_check
          %p2195 = pneg %p402
        $region86: #{language_model_forward.1} parent=75 // pred_check_branch
          %2197 = sbr.rel (%p2195) target = $region88
        $region87: #{language_model_forward.1} parent=75 // pred_region
          %s2199 = ssub.s32 128, 128
          %2200 = vsyncadd %s2191, %s2199
          %s2201 = smul.addr %s32, 128
          %s2202 = scalar_lea.hbm %s14, %s2201
          %s2204 = sshll.u32 %s2194, 4
          %s2205 = int_to_ptr.vmem [resolvable:$true] %s2204
          %2207 = dma.vmem_to_hbm [thread:$0]  %s2205, 128, %s2202, %s2191
        $region88: #{language_model_forward.1} parent=75 // pred_fallthru
          _
      $region76: #{language_model_forward.1} parent=5 // pred_fallthru
        _
      %p2208 = scmp.le.s32.totalorder 2, %s23
      // Predicated region
      $region89: #{language_model_forward.1} parent=5 // pred_check
        %p2209 = pneg %p2208
      $region90: #{language_model_forward.1} parent=5 // pred_check_branch
        %2211 = sbr.rel (%p2209) target = $region92
      $region91: #{language_model_forward.1} parent=5 // pred_region
        %s2212 = ssub.s32 %s23, 2
        // Predicated region
        $region93: #{language_model_forward.1} parent=91 // pred_check
          %p2213 = pneg %p408
        $region94: #{language_model_forward.1} parent=91 // pred_check_branch
          %2215 = sbr.rel (%p2213) target = $region96
        $region95: #{language_model_forward.1} parent=91 // pred_region
          %s2216 = sand.u32 %s393, 1
          %s2217 = scalar_lea.sflag [#allocation4], %s2216
          %s2218 = sand.u32 %s393, 1
          %s2219 = smul.addr %s2218, 8
          %s2220 = scalar_lea.vmem [#allocation3], %s2219
          %2221 = dma.done %s2217, 128
        $region96: #{language_model_forward.1} parent=91 // pred_fallthru
          _
      $region92: #{language_model_forward.1} parent=5 // pred_fallthru
        _
    $region6: #{language_model_forward.1} parent=1 // loop_footer
      %s27 = sadd.s32 1, %s23
    $region7: #{language_model_forward.1} parent=1 // loop_footer_branch
      %22 = sbr.rel target = $region3
    $region8: #{language_model_forward.1} parent=1 // loop_exit
      _
    %2222 = vsyncpa [#allocation4], 1
    %s2223 = scalar_lea.sflag [#allocation4], 1
    %2224 = vsyncpa %s2223, 1

</llo_original>
